<compile_context>
chip_gen: v6e
topology: v6e:2x2x1
jax: 0.10.0
libtpu: 0.0.40
codegen_flags: <defaults>
</compile_context>

<pallas_src>
import functools

import jax
import jax.numpy as jnp
import numpy as np
from jax.experimental import pallas as pl
from jax.experimental.pallas import tpu as pltpu


def _audio_encoder_kernel(x_ref, w1_ref, s1_ref, t1_ref,
                          w2_ref, s2_ref, t2_ref,
                          valid_ref, sel_ref, wfc_ref, bfc_ref,
                          o_ref,
                          a1_ref, p_ref,
                          *, bt, t_len, compute_dtype):
    f32 = jnp.float32
    cdt = compute_dtype
    n = bt * t_len            # x rows in this tile (batch*time flat, channels on lanes)
    m_c = n - 2               # conv1 rows computed (last 2 would need x beyond the tile)
    p2 = t_len // 2           # pooled rows per batch element (L2 valid + 1 junk row)
    m1 = bt * p2              # pooled rows in this tile

    # ---- Conv1d(64->64, k=3, valid) + BN + ReLU at full resolution -------------------
    # Flat layout: row = b*T + t. Three contiguous-tap matmuls (no stride-2 input loads).
    acc = jnp.dot(x_ref[pl.ds(0, m_c), :], w1_ref[0], preferred_element_type=f32)
    acc = acc + jnp.dot(x_ref[pl.ds(1, m_c), :], w1_ref[1], preferred_element_type=f32)
    acc = acc + jnp.dot(x_ref[pl.ds(2, m_c), :], w1_ref[2], preferred_element_type=f32)
    a1_ref[pl.ds(0, m_c), :] = jnp.maximum(acc * s1_ref[...] + t1_ref[...], 0.0)
    # keep the 2 rows that would need x from the next tile finite (they are junk rows)
    a1_ref[pl.ds(m_c, 2), :] = jnp.zeros((2, 64), f32)

    # ---- MaxPool1d(2): one strided pass over the f32 activations ---------------------
    # valid_ref zeroes the single cross-batch junk pooled row per batch element (period
    # p2); that also makes conv2's shifted taps see PyTorch's zero padding at boundaries.
    p = jnp.maximum(a1_ref[pl.ds(0, m1, 2), :],
                    a1_ref[pl.ds(1, m1, 2), :]) * valid_ref[...]      # (m1, 64) f32

    # ---- Conv1d(64->128, k=3, padding=1) + BN + ReLU ----------------------------------
    # Zero-padded pooled scratch: aligned full-width store; left/right taps are plain
    # sublane-offset reads (no misaligned stores, no per-row masked stores).
    @pl.when(pl.program_id(0) == 0)
    def _init_pads():
        p_ref[pl.ds(0, 8), :] = jnp.zeros((8, 64), f32)
        p_ref[pl.ds(m1 + 8, 8), :] = jnp.zeros((8, 64), f32)

    p_ref[pl.ds(8, m1), :] = p
    p_dn = p_ref[pl.ds(7, m1), :]      # p[l-1]; 0 at l == 0 (zeroed junk row / front pad)
    p_up = p_ref[pl.ds(9, m1), :]      # p[l+1]; 0 at l == L2-1 (zeroed junk row / back pad)

    y2 = (jnp.dot(p_dn.astype(cdt), w2_ref[0], preferred_element_type=f32)
          + jnp.dot(p.astype(cdt), w2_ref[1], preferred_element_type=f32)
          + jnp.dot(p_up.astype(cdt), w2_ref[2], preferred_element_type=f32))
    a2 = jnp.maximum(y2 * s2_ref[...] + t2_ref[...], 0.0)             # (m1, 128) f32

    # ---- AdaptiveAvgPool1d(1) on the MXU: (bt, m1) selection matrix (1/L2 valid rows) --
    avg = jnp.dot(sel_ref[...], a2.astype(cdt), preferred_element_type=f32)   # (bt, 128)

    # ---- MLP: Linear(128,128) + ReLU; Dropout(0.2) = identity in eval -----------------
    # TODO(synk): training-mode stochastic Dropout not reproduced (inference identity).
    out = jnp.dot(avg.astype(cdt), wfc_ref[...], preferred_element_type=f32)
    o_ref[...] = jnp.maximum(out + bfc_ref[...], 0.0).astype(o_ref.dtype)


def _two_tensorcore_chip():
    try:
        kind = jax.devices()[0].device_kind.lower()
    except Exception:
        return False
    return any(tag in kind for tag in ("v4", "v5p", "v7"))


def audio_encoder_forward(x, params, *, block_b=64, compute_dtype=jnp.bfloat16,
                          min_grid_steps=None, vmem_budget_bytes=40 * 1024 * 1024):
    """x: (B, 1, 64, T) float32 (mirrors the PyTorch input); returns (B, 128) float32."""
    (w1, b1, g1, be1, rm1, rv1,
     w2, b2, g2, be2, rm2, rv2, wf, bf) = params
    eps = 1e-5
    B, one, C, T = x.shape
    assert one == 1 and C == 64
    # TODO(synk): odd conv1 length (MaxPool1d drop-last) not supported; requires T even.
    assert T >= 4 and T % 2 == 0
    P2 = T // 2                      # pooled rows per batch element (incl. 1 junk row)
    L2 = P2 - 1                      # valid pooled rows per batch element

    if min_grid_steps is None:
        # 2-TensorCore chips (v7x etc.) need >= 2 grid steps to use both cores.
        min_grid_steps = 2 if _two_tensorcore_chip() else 1

    esize = jnp.dtype(compute_dtype).itemsize

    def vmem_estimate(bt):
        n = bt * T
        m1 = n // 2
        return (2 * n * 64 * esize            # x block, double-buffered
                + n * 64 * 4                  # a1 scratch (f32)
                + (m1 + 16) * 64 * 4          # pooled scratch (f32)
                + 3 * m1 * 64 * (4 + esize)   # pooled taps (f32 values + cast copies)
                + m1 * 128 * (4 + esize)      # a2 (f32 + cast copy)
                + 2 * bt * m1 * esize         # avg-pool selection matrix
                + (2 << 20))                  # weights / small blocks / slack

    # Batch tile: multiple of 8 (keeps every block (8,128)-aligned), capped by the VMEM
    # budget (v7x only has 64 MiB) and, on 2-TC chips, so that the grid has >= 2 steps.
    Bt = max(8, (min(block_b, B) // 8) * 8)
    if min_grid_steps > 1:
        b8 = -(-B // 8) * 8
        per_core = -(-b8 // min_grid_steps)
        Bt = min(Bt, max(8, -(-per_core // 8) * 8))
    while Bt > 8 and vmem_estimate(Bt) > vmem_budget_bytes:
        Bt -= 8
    # TODO(synk): for very large Bt*T, conv2 + pooling should be chunked over row blocks
    # instead of materializing the full (M1,128) activation at once.
    Bp = -(-B // Bt) * Bt
    M1 = Bt * P2

    # glue: one fused transpose+cast pass over x; pad only if B is not a tile multiple.
    x_tl = jnp.transpose(x[:, 0], (0, 2, 1)).astype(compute_dtype)     # (B, T, 64)
    if Bp != B:
        x_tl = jnp.concatenate(
            [x_tl, jnp.zeros((Bp - B, T, 64), compute_dtype)], axis=0)
    x_flat = x_tl.reshape(Bp * T, 64)            # layout-compatible reshape (no copy)

    # glue: conv weights (C_out, C_in, K) -> (K, C_in, C_out); fold conv bias + eval-mode
    # BatchNorm into per-channel scale/shift (kept in f32).
    w1_k = jnp.transpose(w1, (2, 1, 0)).astype(compute_dtype)           # (3, 64, 64)
    w2_k = jnp.transpose(w2, (2, 1, 0)).astype(compute_dtype)           # (3, 64, 128)
    s1 = (g1 / jnp.sqrt(rv1 + eps)).astype(jnp.float32)
    t1 = (be1 + s1 * (b1 - rm1)).astype(jnp.float32)
    s2 = (g2 / jnp.sqrt(rv2 + eps)).astype(jnp.float32)
    t2 = (be2 + s2 * (b2 - rm2)).astype(jnp.float32)
    s1 = s1.reshape(1, 64); t1 = t1.reshape(1, 64)
    s2 = s2.reshape(1, 128); t2 = t2.reshape(1, 128)
    wf_t = wf.T.astype(compute_dtype)                                   # (128, 128)
    bf_r = bf.reshape(1, 128).astype(jnp.float32)

    # glue: per-tile constants (constant index_map -> fetched once per pallas_call).
    pos = np.arange(M1) % P2
    valid = jnp.asarray((pos < L2).astype(np.float32).reshape(M1, 1))   # 0 on junk rows
    sel_np = ((np.arange(M1)[None, :] // P2 == np.arange(Bt)[:, None])
              & (pos[None, :] < L2)).astype(np.float32) / float(L2)
    sel = jnp.asarray(sel_np, dtype=compute_dtype)                      # (Bt, M1)

    kernel = functools.partial(_audio_encoder_kernel, bt=Bt, t_len=T,
                               compute_dtype=compute_dtype)

    grid_spec = pltpu.PrefetchScalarGridSpec(
        num_scalar_prefetch=0,
        grid=(Bp // Bt,),
        in_specs=[
            pl.BlockSpec((Bt * T, 64), lambda i: (i, 0)),           # x (per batch tile)
            pl.BlockSpec((3, 64, 64), lambda i: (0, 0, 0)),         # w1 (K, Cin, Cout)
            pl.BlockSpec((1, 64), lambda i: (0, 0)),                # scale1
            pl.BlockSpec((1, 64), lambda i: (0, 0)),                # shift1
            pl.BlockSpec((3, 64, 128), lambda i: (0, 0, 0)),        # w2 (K, Cin, Cout)
            pl.BlockSpec((1, 128), lambda i: (0, 0)),               # scale2
            pl.BlockSpec((1, 128), lambda i: (0, 0)),               # shift2
            pl.BlockSpec((M1, 1), lambda i: (0, 0)),                # valid pooled rows
            pl.BlockSpec((Bt, M1), lambda i: (0, 0)),               # avg-pool selection
            pl.BlockSpec((128, 128), lambda i: (0, 0)),             # fc weight (in, out)
            pl.BlockSpec((1, 128), lambda i: (0, 0)),               # fc bias
        ],
        out_specs=pl.BlockSpec((Bt, 128), lambda i: (i, 0)),
        scratch_shapes=[
            pltpu.VMEM((Bt * T, 64), jnp.float32),                  # full-res conv1 acts
            pltpu.VMEM((M1 + 16, 64), jnp.float32),                 # zero-padded pooled acts
        ],
    )
    out = pl.pallas_call(
        kernel,
        out_shape=jax.ShapeDtypeStruct((Bp, 128), jnp.float32),
        grid_spec=grid_spec,
        compiler_params=pltpu.CompilerParams(
            dimension_semantics=("parallel",),
            vmem_limit_bytes=int(min(max(32 * 1024 * 1024, 2 * vmem_estimate(Bt)),
                                     64 * 1024 * 1024))),
    )(x_flat, w1_k, s1, t1, w2_k, s2, t2, valid, sel, wf_t, bf_r)
    return out[:B]


def init_params(key):
    ks = jax.random.split(key, 14)
    w1 = 0.05 * jax.random.normal(ks[0], (64, 64, 3), jnp.float32)
    b1 = 0.05 * jax.random.normal(ks[1], (64,), jnp.float32)
    g1 = 1.0 + 0.1 * jax.random.normal(ks[2], (64,), jnp.float32)
    be1 = 0.1 * jax.random.normal(ks[3], (64,), jnp.float32)
    m1 = 0.1 * jax.random.normal(ks[4], (64,), jnp.float32)
    v1 = 1.0 + 0.5 * jax.random.uniform(ks[5], (64,), jnp.float32)
    w2 = 0.05 * jax.random.normal(ks[6], (128, 64, 3), jnp.float32)
    b2 = 0.05 * jax.random.normal(ks[7], (128,), jnp.float32)
    g2 = 1.0 + 0.1 * jax.random.normal(ks[8], (128,), jnp.float32)
    be2 = 0.1 * jax.random.normal(ks[9], (128,), jnp.float32)
    m2 = 0.1 * jax.random.normal(ks[10], (128,), jnp.float32)
    v2 = 1.0 + 0.5 * jax.random.uniform(ks[11], (128,), jnp.float32)
    wf = 0.05 * jax.random.normal(ks[12], (128, 128), jnp.float32)
    bf = 0.05 * jax.random.normal(ks[13], (128,), jnp.float32)
    return (w1, b1, g1, be1, m1, v1, w2, b2, g2, be2, m2, v2, wf, bf)


def reference_forward(x, params):
    """Pure-JAX reference matching PyTorch eval-mode forward semantics."""
    (w1, b1, g1, be1, rm1, rv1,
     w2, b2, g2, be2, rm2, rv2, wf, bf) = params
    eps = 1e-5
    xc = x[:, 0]                                    # (B, 64, T)
    B = xc.shape[0]
    T = xc.shape[-1]
    L1 = T - 2
    y1 = sum(jnp.einsum('bct,oc->bot', xc[:, :, k:k + L1], w1[:, :, k])
             for k in range(3)) + b1[None, :, None]
    a1 = jax.nn.relu((y1 - rm1[None, :, None]) / jnp.sqrt(rv1 + eps)[None, :, None]
                     * g1[None, :, None] + be1[None, :, None])
    L2 = L1 // 2
    p = a1[:, :, :L2 * 2].reshape(B, 64, L2, 2).max(-1)             # MaxPool1d(2)
    pp = jnp.pad(p, ((0, 0), (0, 0), (1, 1)))
    y2 = sum(jnp.einsum('bct,oc->bot', pp[:, :, k:k + L2], w2[:, :, k])
             for k in range(3)) + b2[None, :, None]
    a2 = jax.nn.relu((y2 - rm2[None, :, None]) / jnp.sqrt(rv2 + eps)[None, :, None]
                     * g2[None, :, None] + be2[None, :, None])
    h = a2.mean(-1)                                  # AdaptiveAvgPool1d(1) + squeeze
    return jax.nn.relu(h @ wf.T + bf[None, :])


if __name__ == "__main__":
    key = jax.random.PRNGKey(0)
    kx1, kx2, kp = jax.random.split(key, 3)
    params = init_params(kp)

    # Run 1: f32 matmul operands, B=8 (one batch tile), T=34 (L1=32, L2=16).
    B1, T1 = 8, 34
    x1 = jax.random.normal(kx1, (B1, 1, 64, T1), jnp.float32)
    out1 = jax.block_until_ready(
        audio_encoder_forward(x1, params, compute_dtype=jnp.float32))
    assert out1.shape == (B1, 128)
    ref1 = reference_forward(x1, params)
    if not bool(jnp.allclose(out1, ref1, atol=5e-4, rtol=5e-4)):
        raise AssertionError(
            f"f32 kernel/reference mismatch, max abs err = {jnp.max(jnp.abs(out1 - ref1))}")

    # Run 2: default bf16 matmul operands (f32 accumulation), batch padding (12 -> 16),
    # multi-step grid, T=26 (L1=24, L2=12).
    B2, T2 = 12, 26
    x2 = jax.random.normal(kx2, (B2, 1, 64, T2), jnp.float32)
    out2 = jax.block_until_ready(audio_encoder_forward(x2, params))
    assert out2.shape == (B2, 128)
    ref2 = reference_forward(x2, params)
    if not bool(jnp.allclose(out2, ref2, atol=5e-2, rtol=5e-2)):
        raise AssertionError(
            f"bf16 kernel/reference mismatch, max abs err = {jnp.max(jnp.abs(out2 - ref2))}")

    print("KERNEL_OK")
</pallas_src>

<mosaic_0001>
module attributes {stable_mosaic.version = 11 : i64} {
  func.func @_audio_encoder_kernel(%arg0: i32, %arg1: memref<272x64xf32, #tpu.memory_space<vmem>>, %arg2: memref<3x64x64xf32, #tpu.memory_space<vmem>>, %arg3: memref<1x64xf32, #tpu.memory_space<vmem>>, %arg4: memref<1x64xf32, #tpu.memory_space<vmem>>, %arg5: memref<3x64x128xf32, #tpu.memory_space<vmem>>, %arg6: memref<1x128xf32, #tpu.memory_space<vmem>>, %arg7: memref<1x128xf32, #tpu.memory_space<vmem>>, %arg8: memref<136x1xf32, #tpu.memory_space<vmem>>, %arg9: memref<8x136xf32, #tpu.memory_space<vmem>>, %arg10: memref<128x128xf32, #tpu.memory_space<vmem>>, %arg11: memref<1x128xf32, #tpu.memory_space<vmem>>, %arg12: memref<8x128xf32, #tpu.memory_space<vmem>>, %arg13: memref<272x64xf32, #tpu.memory_space<vmem>>, %arg14: memref<152x64xf32, #tpu.memory_space<vmem>>) attributes {dimension_semantics = [#tpu.dimension_semantics<parallel>], iteration_bounds = array<i64: 1>, scalar_prefetch = 0 : i64, scratch_operands = 2 : i64, tpu.core_type = #tpu.core_type<tc>, window_params = [{transform_indices = @transform_0, window_bounds = array<i64: 272, 64>}, {pipeline_mode = #tpu.pipeline_mode<synchronous>, transform_indices = @transform_1, window_bounds = array<i64: 3, 64, 64>}, {pipeline_mode = #tpu.pipeline_mode<synchronous>, transform_indices = @transform_2, window_bounds = array<i64: 1, 64>}, {pipeline_mode = #tpu.pipeline_mode<synchronous>, transform_indices = @transform_3, window_bounds = array<i64: 1, 64>}, {pipeline_mode = #tpu.pipeline_mode<synchronous>, transform_indices = @transform_4, window_bounds = array<i64: 3, 64, 128>}, {pipeline_mode = #tpu.pipeline_mode<synchronous>, transform_indices = @transform_5, window_bounds = array<i64: 1, 128>}, {pipeline_mode = #tpu.pipeline_mode<synchronous>, transform_indices = @transform_6, window_bounds = array<i64: 1, 128>}, {pipeline_mode = #tpu.pipeline_mode<synchronous>, transform_indices = @transform_7, window_bounds = array<i64: 136, 1>}, {pipeline_mode = #tpu.pipeline_mode<synchronous>, transform_indices = @transform_8, window_bounds = array<i64: 8, 136>}, {pipeline_mode = #tpu.pipeline_mode<synchronous>, transform_indices = @transform_9, window_bounds = array<i64: 128, 128>}, {pipeline_mode = #tpu.pipeline_mode<synchronous>, transform_indices = @transform_10, window_bounds = array<i64: 1, 128>}, {transform_indices = @transform_11, window_bounds = array<i64: 8, 128>}]} {
    %c0 = arith.constant 0 : index
    %c0_0 = arith.constant 0 : index
    %0 = vector.load %arg1[%c0, %c0_0] : memref<272x64xf32, #tpu.memory_space<vmem>>, vector<270x64xf32>
    %c0_1 = arith.constant 0 : index
    %c0_2 = arith.constant 0 : index
    %c0_3 = arith.constant 0 : index
    %1 = vector.load %arg2[%c0_1, %c0_2, %c0_3] : memref<3x64x64xf32, #tpu.memory_space<vmem>>, vector<1x64x64xf32>
    %2 = vector.shape_cast %1 : vector<1x64x64xf32> to vector<64x64xf32>
    %cst = arith.constant dense<0.000000e+00> : vector<270x64xf32>
    %3 = tpu.matmul %0, %2, %cst {dimension_numbers = #tpu.dot_dimension_numbers<[1], [0], [0], [1], [0, 0, 1, 1], [], []>} : vector<270x64xf32>, vector<64x64xf32>, vector<270x64xf32> -> vector<270x64xf32>
    %c1 = arith.constant 1 : index
    %c0_4 = arith.constant 0 : index
    %4 = vector.load %arg1[%c1, %c0_4] : memref<272x64xf32, #tpu.memory_space<vmem>>, vector<270x64xf32>
    %c1_5 = arith.constant 1 : index
    %c0_6 = arith.constant 0 : index
    %c0_7 = arith.constant 0 : index
    %5 = vector.load %arg2[%c1_5, %c0_6, %c0_7] : memref<3x64x64xf32, #tpu.memory_space<vmem>>, vector<1x64x64xf32>
    %6 = vector.shape_cast %5 : vector<1x64x64xf32> to vector<64x64xf32>
    %cst_8 = arith.constant dense<0.000000e+00> : vector<270x64xf32>
    %7 = tpu.matmul %4, %6, %cst_8 {dimension_numbers = #tpu.dot_dimension_numbers<[1], [0], [0], [1], [0, 0, 1, 1], [], []>} : vector<270x64xf32>, vector<64x64xf32>, vector<270x64xf32> -> vector<270x64xf32>
    %8 = arith.addf %3, %7 : vector<270x64xf32>
    %c2 = arith.constant 2 : index
    %c0_9 = arith.constant 0 : index
    %9 = vector.load %arg1[%c2, %c0_9] : memref<272x64xf32, #tpu.memory_space<vmem>>, vector<270x64xf32>
    %c2_10 = arith.constant 2 : index
    %c0_11 = arith.constant 0 : index
    %c0_12 = arith.constant 0 : index
    %10 = vector.load %arg2[%c2_10, %c0_11, %c0_12] : memref<3x64x64xf32, #tpu.memory_space<vmem>>, vector<1x64x64xf32>
    %11 = vector.shape_cast %10 : vector<1x64x64xf32> to vector<64x64xf32>
    %cst_13 = arith.constant dense<0.000000e+00> : vector<270x64xf32>
    %12 = tpu.matmul %9, %11, %cst_13 {dimension_numbers = #tpu.dot_dimension_numbers<[1], [0], [0], [1], [0, 0, 1, 1], [], []>} : vector<270x64xf32>, vector<64x64xf32>, vector<270x64xf32> -> vector<270x64xf32>
    %13 = arith.addf %8, %12 : vector<270x64xf32>
    %c0_14 = arith.constant 0 : index
    %c0_15 = arith.constant 0 : index
    %14 = vector.load %arg3[%c0_14, %c0_15] : memref<1x64xf32, #tpu.memory_space<vmem>>, vector<1x64xf32>
    %15 = vector.broadcast %14 : vector<1x64xf32> to vector<270x64xf32>
    %16 = arith.mulf %13, %15 : vector<270x64xf32>
    %c0_16 = arith.constant 0 : index
    %c0_17 = arith.constant 0 : index
    %17 = vector.load %arg4[%c0_16, %c0_17] : memref<1x64xf32, #tpu.memory_space<vmem>>, vector<1x64xf32>
    %18 = vector.broadcast %17 : vector<1x64xf32> to vector<270x64xf32>
    %19 = arith.addf %16, %18 : vector<270x64xf32>
    %cst_18 = arith.constant 0.000000e+00 : f32
    %20 = vector.broadcast %cst_18 : f32 to vector<270x64xf32>
    %21 = arith.maximumf %19, %20 : vector<270x64xf32>
    %c0_19 = arith.constant 0 : index
    %c0_20 = arith.constant 0 : index
    %22 = vector.load %arg13[%c0_19, %c0_20] : memref<272x64xf32, #tpu.memory_space<vmem>>, vector<270x64xf32>
    tpu.vector_store %arg13[%c0_19, %c0_20], %21 {strides = array<i32>} : memref<272x64xf32, #tpu.memory_space<vmem>>, vector<270x64xf32>,
    %cst_21 = arith.constant 0.000000e+00 : f32
    %23 = vector.broadcast %cst_21 : f32 to vector<2x64xf32>
    %c270 = arith.constant 270 : index
    %c0_22 = arith.constant 0 : index
    %24 = vector.load %arg13[%c270, %c0_22] : memref<272x64xf32, #tpu.memory_space<vmem>>, vector<2x64xf32>
    tpu.vector_store %arg13[%c270, %c0_22], %23 {strides = array<i32>} : memref<272x64xf32, #tpu.memory_space<vmem>>, vector<2x64xf32>,
    %c0_23 = arith.constant 0 : index
    %c0_24 = arith.constant 0 : index
    %25 = tpu.strided_load %arg13[%c0_23, %c0_24] {strides = array<i32: 2, 1>} : memref<272x64xf32, #tpu.memory_space<vmem>>, vector<136x64xf32>
    %c1_25 = arith.constant 1 : index
    %c0_26 = arith.constant 0 : index
    %26 = tpu.strided_load %arg13[%c1_25, %c0_26] {strides = array<i32: 2, 1>} : memref<272x64xf32, #tpu.memory_space<vmem>>, vector<136x64xf32>
    %27 = arith.maximumf %25, %26 : vector<136x64xf32>
    %c0_27 = arith.constant 0 : index
    %c0_28 = arith.constant 0 : index
    %28 = vector.load %arg8[%c0_27, %c0_28] : memref<136x1xf32, #tpu.memory_space<vmem>>, vector<136x1xf32>
    %29 = vector.broadcast %28 : vector<136x1xf32> to vector<136x64xf32>
    %30 = arith.mulf %27, %29 : vector<136x64xf32>
    %c0_i32 = arith.constant 0 : i32
    %31 = arith.cmpi eq, %arg0, %c0_i32 : i32
    %32 = arith.extui %31 : i1 to i32
    %c0_i32_29 = arith.constant 0 : i32
    %33 = arith.cmpi ne, %32, %c0_i32_29 : i32
    scf.if %33 {
      %cst_61 = arith.constant 0.000000e+00 : f32
      %66 = vector.broadcast %cst_61 : f32 to vector<8x64xf32>
      %c0_62 = arith.constant 0 : index
      %c0_63 = arith.constant 0 : index
      %67 = vector.load %arg14[%c0_62, %c0_63] : memref<152x64xf32, #tpu.memory_space<vmem>>, vector<8x64xf32>
      tpu.vector_store %arg14[%c0_62, %c0_63], %66 {strides = array<i32>} : memref<152x64xf32, #tpu.memory_space<vmem>>, vector<8x64xf32>,
      %cst_64 = arith.constant 0.000000e+00 : f32
      %68 = vector.broadcast %cst_64 : f32 to vector<8x64xf32>
      %c144 = arith.constant 144 : index
      %c0_65 = arith.constant 0 : index
      %69 = vector.load %arg14[%c144, %c0_65] : memref<152x64xf32, #tpu.memory_space<vmem>>, vector<8x64xf32>
      tpu.vector_store %arg14[%c144, %c0_65], %68 {strides = array<i32>} : memref<152x64xf32, #tpu.memory_space<vmem>>, vector<8x64xf32>,
    } else {
    }
    %c8 = arith.constant 8 : index
    %c0_30 = arith.constant 0 : index
    %34 = vector.load %arg14[%c8, %c0_30] : memref<152x64xf32, #tpu.memory_space<vmem>>, vector<136x64xf32>
    tpu.vector_store %arg14[%c8, %c0_30], %30 {strides = array<i32>} : memref<152x64xf32, #tpu.memory_space<vmem>>, vector<136x64xf32>,
    %c7 = arith.constant 7 : index
    %c0_31 = arith.constant 0 : index
    %35 = vector.load %arg14[%c7, %c0_31] : memref<152x64xf32, #tpu.memory_space<vmem>>, vector<136x64xf32>
    %c9 = arith.constant 9 : index
    %c0_32 = arith.constant 0 : index
    %36 = vector.load %arg14[%c9, %c0_32] : memref<152x64xf32, #tpu.memory_space<vmem>>, vector<136x64xf32>
    %c0_33 = arith.constant 0 : index
    %c0_34 = arith.constant 0 : index
    %c0_35 = arith.constant 0 : index
    %37 = vector.load %arg5[%c0_33, %c0_34, %c0_35] : memref<3x64x128xf32, #tpu.memory_space<vmem>>, vector<1x64x128xf32>
    %38 = vector.shape_cast %37 : vector<1x64x128xf32> to vector<64x128xf32>
    %cst_36 = arith.constant dense<0.000000e+00> : vector<136x128xf32>
    %39 = tpu.matmul %35, %38, %cst_36 {dimension_numbers = #tpu.dot_dimension_numbers<[1], [0], [0], [1], [0, 0, 1, 1], [], []>} : vector<136x64xf32>, vector<64x128xf32>, vector<136x128xf32> -> vector<136x128xf32>
    %c1_37 = arith.constant 1 : index
    %c0_38 = arith.constant 0 : index
    %c0_39 = arith.constant 0 : index
    %40 = vector.load %arg5[%c1_37, %c0_38, %c0_39] : memref<3x64x128xf32, #tpu.memory_space<vmem>>, vector<1x64x128xf32>
    %41 = vector.shape_cast %40 : vector<1x64x128xf32> to vector<64x128xf32>
    %cst_40 = arith.constant dense<0.000000e+00> : vector<136x128xf32>
    %42 = tpu.matmul %30, %41, %cst_40 {dimension_numbers = #tpu.dot_dimension_numbers<[1], [0], [0], [1], [0, 0, 1, 1], [], []>} : vector<136x64xf32>, vector<64x128xf32>, vector<136x128xf32> -> vector<136x128xf32>
    %43 = arith.addf %39, %42 : vector<136x128xf32>
    %c2_41 = arith.constant 2 : index
    %c0_42 = arith.constant 0 : index
    %c0_43 = arith.constant 0 : index
    %44 = vector.load %arg5[%c2_41, %c0_42, %c0_43] : memref<3x64x128xf32, #tpu.memory_space<vmem>>, vector<1x64x128xf32>
    %45 = vector.shape_cast %44 : vector<1x64x128xf32> to vector<64x128xf32>
    %cst_44 = arith.constant dense<0.000000e+00> : vector<136x128xf32>
    %46 = tpu.matmul %36, %45, %cst_44 {dimension_numbers = #tpu.dot_dimension_numbers<[1], [0], [0], [1], [0, 0, 1, 1], [], []>} : vector<136x64xf32>, vector<64x128xf32>, vector<136x128xf32> -> vector<136x128xf32>
    %47 = arith.addf %43, %46 : vector<136x128xf32>
    %c0_45 = arith.constant 0 : index
    %c0_46 = arith.constant 0 : index
    %48 = vector.load %arg6[%c0_45, %c0_46] : memref<1x128xf32, #tpu.memory_space<vmem>>, vector<1x128xf32>
    %49 = vector.broadcast %48 : vector<1x128xf32> to vector<136x128xf32>
    %50 = arith.mulf %47, %49 : vector<136x128xf32>
    %c0_47 = arith.constant 0 : index
    %c0_48 = arith.constant 0 : index
    %51 = vector.load %arg7[%c0_47, %c0_48] : memref<1x128xf32, #tpu.memory_space<vmem>>, vector<1x128xf32>
    %52 = vector.broadcast %51 : vector<1x128xf32> to vector<136x128xf32>
    %53 = arith.addf %50, %52 : vector<136x128xf32>
    %cst_49 = arith.constant 0.000000e+00 : f32
    %54 = vector.broadcast %cst_49 : f32 to vector<136x128xf32>
    %55 = arith.maximumf %53, %54 : vector<136x128xf32>
    %c0_50 = arith.constant 0 : index
    %c0_51 = arith.constant 0 : index
    %56 = vector.load %arg9[%c0_50, %c0_51] : memref<8x136xf32, #tpu.memory_space<vmem>>, vector<8x136xf32>
    %cst_52 = arith.constant dense<0.000000e+00> : vector<8x128xf32>
    %57 = tpu.matmul %56, %55, %cst_52 {dimension_numbers = #tpu.dot_dimension_numbers<[1], [0], [0], [1], [0, 0, 1, 1], [], []>} : vector<8x136xf32>, vector<136x128xf32>, vector<8x128xf32> -> vector<8x128xf32>
    %c0_53 = arith.constant 0 : index
    %c0_54 = arith.constant 0 : index
    %58 = vector.load %arg10[%c0_53, %c0_54] : memref<128x128xf32, #tpu.memory_space<vmem>>, vector<128x128xf32>
    %cst_55 = arith.constant dense<0.000000e+00> : vector<8x128xf32>
    %59 = tpu.matmul %57, %58, %cst_55 {dimension_numbers = #tpu.dot_dimension_numbers<[1], [0], [0], [1], [0, 0, 1, 1], [], []>} : vector<8x128xf32>, vector<128x128xf32>, vector<8x128xf32> -> vector<8x128xf32>
    %c0_56 = arith.constant 0 : index
    %c0_57 = arith.constant 0 : index
    %60 = vector.load %arg11[%c0_56, %c0_57] : memref<1x128xf32, #tpu.memory_space<vmem>>, vector<1x128xf32>
    %61 = vector.broadcast %60 : vector<1x128xf32> to vector<8x128xf32>
    %62 = arith.addf %59, %61 : vector<8x128xf32>
    %cst_58 = arith.constant 0.000000e+00 : f32
    %63 = vector.broadcast %cst_58 : f32 to vector<8x128xf32>
    %64 = arith.maximumf %62, %63 : vector<8x128xf32>
    %c0_59 = arith.constant 0 : index
    %c0_60 = arith.constant 0 : index
    %65 = vector.load %arg12[%c0_59, %c0_60] : memref<8x128xf32, #tpu.memory_space<vmem>>, vector<8x128xf32>
    tpu.vector_store %arg12[%c0_59, %c0_60], %64 {strides = array<i32>} : memref<8x128xf32, #tpu.memory_space<vmem>>, vector<8x128xf32>,
    return
  }
  func.func @transform_0(%arg0: i32) -> (i32, i32) {
    %c0_i32 = arith.constant 0 : i32
    %c0_i32_0 = arith.constant 0 : i32
    return %arg0, %c0_i32 : i32, i32
  }
  func.func @transform_1(%arg0: i32) -> (i32, i32, i32) {
    %c0_i32 = arith.constant 0 : i32
    %c0_i32_0 = arith.constant 0 : i32
    %c0_i32_1 = arith.constant 0 : i32
    %c0_i32_2 = arith.constant 0 : i32
    return %c0_i32, %c0_i32_0, %c0_i32_1 : i32, i32, i32
  }
  func.func @transform_2(%arg0: i32) -> (i32, i32) {
    %c0_i32 = arith.constant 0 : i32
    %c0_i32_0 = arith.constant 0 : i32
    %c0_i32_1 = arith.constant 0 : i32
    return %c0_i32, %c0_i32_0 : i32, i32
  }
  func.func @transform_3(%arg0: i32) -> (i32, i32) {
    %c0_i32 = arith.constant 0 : i32
    %c0_i32_0 = arith.constant 0 : i32
    %c0_i32_1 = arith.constant 0 : i32
    return %c0_i32, %c0_i32_0 : i32, i32
  }
  func.func @transform_4(%arg0: i32) -> (i32, i32, i32) {
    %c0_i32 = arith.constant 0 : i32
    %c0_i32_0 = arith.constant 0 : i32
    %c0_i32_1 = arith.constant 0 : i32
    %c0_i32_2 = arith.constant 0 : i32
    return %c0_i32, %c0_i32_0, %c0_i32_1 : i32, i32, i32
  }
  func.func @transform_5(%arg0: i32) -> (i32, i32) {
    %c0_i32 = arith.constant 0 : i32
    %c0_i32_0 = arith.constant 0 : i32
    %c0_i32_1 = arith.constant 0 : i32
    return %c0_i32, %c0_i32_0 : i32, i32
  }
  func.func @transform_6(%arg0: i32) -> (i32, i32) {
    %c0_i32 = arith.constant 0 : i32
    %c0_i32_0 = arith.constant 0 : i32
    %c0_i32_1 = arith.constant 0 : i32
    return %c0_i32, %c0_i32_0 : i32, i32
  }
  func.func @transform_7(%arg0: i32) -> (i32, i32) {
    %c0_i32 = arith.constant 0 : i32
    %c0_i32_0 = arith.constant 0 : i32
    %c0_i32_1 = arith.constant 0 : i32
    return %c0_i32, %c0_i32_0 : i32, i32
  }
  func.func @transform_8(%arg0: i32) -> (i32, i32) {
    %c0_i32 = arith.constant 0 : i32
    %c0_i32_0 = arith.constant 0 : i32
    %c0_i32_1 = arith.constant 0 : i32
    return %c0_i32, %c0_i32_0 : i32, i32
  }
  func.func @transform_9(%arg0: i32) -> (i32, i32) {
    %c0_i32 = arith.constant 0 : i32
    %c0_i32_0 = arith.constant 0 : i32
    %c0_i32_1 = arith.constant 0 : i32
    return %c0_i32, %c0_i32_0 : i32, i32
  }
  func.func @transform_10(%arg0: i32) -> (i32, i32) {
    %c0_i32 = arith.constant 0 : i32
    %c0_i32_0 = arith.constant 0 : i32
    %c0_i32_1 = arith.constant 0 : i32
    return %c0_i32, %c0_i32_0 : i32, i32
  }
  func.func @transform_11(%arg0: i32) -> (i32, i32) {
    %c0_i32 = arith.constant 0 : i32
    %c0_i32_0 = arith.constant 0 : i32
    return %arg0, %c0_i32 : i32, i32
  }
}

</mosaic_0001>

<llo_original>
// kernel: tpu_custom_call.1
$region0: #{tpu_custom_call.1}
  #allocation0 [shape = 'u32[]', space=smem, size = 0x4, offset = 0x4, fixed_abs, tag = 'smem constant byte address 0x4 - core index']
  #allocation1 [shape = 'u32[144,128]{1,0:T(1,128)}', space=vmem, size = 0x12000, scoped, tag = 'internal scratch']
  #allocation2 [shape = 'f32[272,64]{1,0:T(8,128)}', space=vmem, size = 0x22000, scoped, tag = 'scratch operand']
  #allocation3 [shape = 'f32[152,64]{1,0:T(8,128)}', space=vmem, size = 0x13000, scoped, tag = 'scratch operand']
  %s0 = inlined_call_operand.vmem [shape: f32[272,64], index: 0, kind: input, shape index: {}]
  %s1 = inlined_call_operand.vmem [shape: f32[3,64,64], index: 1, kind: input, shape index: {}]
  %s2 = inlined_call_operand.vmem [shape: f32[1,64], index: 2, kind: input, shape index: {}]
  %s3 = inlined_call_operand.vmem [shape: f32[1,64], index: 3, kind: input, shape index: {}]
  %s4 = inlined_call_operand.vmem [shape: f32[3,64,128], index: 4, kind: input, shape index: {}]
  %s5 = inlined_call_operand.vmem [shape: f32[1,128], index: 5, kind: input, shape index: {}]
  %s6 = inlined_call_operand.vmem [shape: f32[1,128], index: 6, kind: input, shape index: {}]
  %s7 = inlined_call_operand.vmem [shape: f32[136,1], index: 7, kind: input, shape index: {}]
  %s8 = inlined_call_operand.vmem [shape: f32[8,136], index: 8, kind: input, shape index: {}]
  %s9 = inlined_call_operand.vmem [shape: f32[128,128], index: 9, kind: input, shape index: {}]
  %s10 = inlined_call_operand.vmem [shape: f32[1,128], index: 10, kind: input, shape index: {}]
  %s11 = inlined_call_operand.hbm [shape: f32[8,128], index: 11, kind: output, shape index: {}]
  %s12 = sld [smem:[#allocation0]]
  $region58: #{tpu_custom_call.1} parent=0
    _
  %s14 = ssub.s32 1, %s12
  %s15 = scalar_select 0, %s14, %s12
  $region1: #{tpu_custom_call.1} parent=0
    #allocation4 [shape = 'u8[4096]{0}', space=vmem, size = 0x1000, scoped, tag = 'output window, operand 0, single buffered']
    #allocation5 [shape = 's32[1]{0}', space=sflag, size = 0x4, scoped, tag = 'scoped memory for tpu_custom_call.1']
    %16 = vsyncpa [#allocation5], 0
    // Predicated region
    $region2: #{tpu_custom_call.1} parent=1 // pred_check
      _
    $region3: #{tpu_custom_call.1} parent=1 // pred_check_branch
      %18 = sbr.rel (0) target = $region5
    $region4: #{tpu_custom_call.1} parent=1 // pred_region
      _
    $region5: #{tpu_custom_call.1} parent=1 // pred_fallthru
      _
    // Predicated region
    $region6: #{tpu_custom_call.1} parent=1 // pred_check
      _
    $region7: #{tpu_custom_call.1} parent=1 // pred_check_branch
      %20 = sbr.rel (0) target = $region9
    $region8: #{tpu_custom_call.1} parent=1 // pred_region
      _
    $region9: #{tpu_custom_call.1} parent=1 // pred_fallthru
      _
    // Predicated region
    $region10: #{tpu_custom_call.1} parent=1 // pred_check
      _
    $region11: #{tpu_custom_call.1} parent=1 // pred_check_branch
      %22 = sbr.rel (0) target = $region13
    $region12: #{tpu_custom_call.1} parent=1 // pred_region
      _
    $region13: #{tpu_custom_call.1} parent=1 // pred_fallthru
      _
    // Predicated region
    $region14: #{tpu_custom_call.1} parent=1 // pred_check
      _
    $region15: #{tpu_custom_call.1} parent=1 // pred_check_branch
      %24 = sbr.rel (0) target = $region17
    $region16: #{tpu_custom_call.1} parent=1 // pred_region
      _
    $region17: #{tpu_custom_call.1} parent=1 // pred_fallthru
      _
    // Predicated region
    $region18: #{tpu_custom_call.1} parent=1 // pred_check
      _
    $region19: #{tpu_custom_call.1} parent=1 // pred_check_branch
      %26 = sbr.rel (0) target = $region21
    $region20: #{tpu_custom_call.1} parent=1 // pred_region
      _
    $region21: #{tpu_custom_call.1} parent=1 // pred_fallthru
      _
    // Predicated region
    $region22: #{tpu_custom_call.1} parent=1 // pred_check
      _
    $region23: #{tpu_custom_call.1} parent=1 // pred_check_branch
      %28 = sbr.rel (0) target = $region25
    $region24: #{tpu_custom_call.1} parent=1 // pred_region
      _
    $region25: #{tpu_custom_call.1} parent=1 // pred_fallthru
      _
    // Predicated region
    $region26: #{tpu_custom_call.1} parent=1 // pred_check
      _
    $region27: #{tpu_custom_call.1} parent=1 // pred_check_branch
      %30 = sbr.rel (0) target = $region29
    $region28: #{tpu_custom_call.1} parent=1 // pred_region
      _
    $region29: #{tpu_custom_call.1} parent=1 // pred_fallthru
      _
    // Predicated region
    $region30: #{tpu_custom_call.1} parent=1 // pred_check
      _
    $region31: #{tpu_custom_call.1} parent=1 // pred_check_branch
      %32 = sbr.rel (0) target = $region33
    $region32: #{tpu_custom_call.1} parent=1 // pred_region
      _
    $region33: #{tpu_custom_call.1} parent=1 // pred_fallthru
      _
    // Predicated region
    $region34: #{tpu_custom_call.1} parent=1 // pred_check
      _
    $region35: #{tpu_custom_call.1} parent=1 // pred_check_branch
      %34 = sbr.rel (0) target = $region37
    $region36: #{tpu_custom_call.1} parent=1 // pred_region
      _
    $region37: #{tpu_custom_call.1} parent=1 // pred_fallthru
      _
    // Predicated region
    $region38: #{tpu_custom_call.1} parent=1 // pred_check
      _
    $region39: #{tpu_custom_call.1} parent=1 // pred_check_branch
      %36 = sbr.rel (0) target = $region41
    $region40: #{tpu_custom_call.1} parent=1 // pred_region
      _
    $region41: #{tpu_custom_call.1} parent=1 // pred_fallthru
      _
    // Predicated region
    $region42: #{tpu_custom_call.1} parent=1 // pred_check
      _
    $region43: #{tpu_custom_call.1} parent=1 // pred_check_branch
      %38 = sbr.rel (0) target = $region45
    $region44: #{tpu_custom_call.1} parent=1 // pred_region
      _
    $region45: #{tpu_custom_call.1} parent=1 // pred_fallthru
      _
    %v39 = vld [vmem:[%s0] sm:$0xff]
    %v40 = vld [vmem:[%s0 + $0x8] sm:$0xff]
    %v41 = vld [vmem:[%s0 + $0x10] sm:$0xff]
    %v42 = vld [vmem:[%s0 + $0x18] sm:$0xff]
    %v43 = vld [vmem:[%s0 + $0x20] sm:$0xff]
    %v44 = vld [vmem:[%s0 + $0x28] sm:$0xff]
    %v45 = vld [vmem:[%s0 + $0x30] sm:$0xff]
    %v46 = vld [vmem:[%s0 + $0x38] sm:$0xff]
    %v47 = vld [vmem:[%s0 + $0x40] sm:$0xff]
    %v48 = vld [vmem:[%s0 + $0x48] sm:$0xff]
    %v49 = vld [vmem:[%s0 + $0x50] sm:$0xff]
    %v50 = vld [vmem:[%s0 + $0x58] sm:$0xff]
    %v51 = vld [vmem:[%s0 + $0x60] sm:$0xff]
    %v52 = vld [vmem:[%s0 + $0x68] sm:$0xff]
    %v53 = vld [vmem:[%s0 + $0x70] sm:$0xff]
    %v54 = vld [vmem:[%s0 + $0x78] sm:$0xff]
    %v55 = vld [vmem:[%s0 + $0x80] sm:$0xff]
    %v56 = vld [vmem:[%s0 + $0x88] sm:$0xff]
    %v57 = vld [vmem:[%s0 + $0x90] sm:$0xff]
    %v58 = vld [vmem:[%s0 + $0x98] sm:$0xff]
    %v59 = vld [vmem:[%s0 + $0xa0] sm:$0xff]
    %v60 = vld [vmem:[%s0 + $0xa8] sm:$0xff]
    %v61 = vld [vmem:[%s0 + $0xb0] sm:$0xff]
    %v62 = vld [vmem:[%s0 + $0xb8] sm:$0xff]
    %v63 = vld [vmem:[%s0 + $0xc0] sm:$0xff]
    %v64 = vld [vmem:[%s0 + $0xc8] sm:$0xff]
    %v65 = vld [vmem:[%s0 + $0xd0] sm:$0xff]
    %v66 = vld [vmem:[%s0 + $0xd8] sm:$0xff]
    %v67 = vld [vmem:[%s0 + $0xe0] sm:$0xff]
    %v68 = vld [vmem:[%s0 + $0xe8] sm:$0xff]
    %v69 = vld [vmem:[%s0 + $0xf0] sm:$0xff]
    %v70 = vld [vmem:[%s0 + $0xf8] sm:$0xff]
    %v71 = vld [vmem:[%s0 + $0x100] sm:$0xff]
    %v72 = vld [vmem:[%s0 + $0x108] sm:$0x3f]
    %v73 = vld [vmem:[%s1] sm:$0xff]
    %v74 = vld [vmem:[%s1 + $0x8] sm:$0xff]
    %v75 = vld [vmem:[%s1 + $0x10] sm:$0xff]
    %v76 = vld [vmem:[%s1 + $0x18] sm:$0xff]
    %v77 = vld [vmem:[%s1 + $0x20] sm:$0xff]
    %v78 = vld [vmem:[%s1 + $0x28] sm:$0xff]
    %v79 = vld [vmem:[%s1 + $0x30] sm:$0xff]
    %v80 = vld [vmem:[%s1 + $0x38] sm:$0xff]
    %v81 = vld [vmem:[%s0 + $0x1] sm:$0xff]
    %v82 = vld [vmem:[%s0 + $0x9] sm:$0xff]
    %v83 = vld [vmem:[%s0 + $0x11] sm:$0xff]
    %v84 = vld [vmem:[%s0 + $0x19] sm:$0xff]
    %v85 = vld [vmem:[%s0 + $0x21] sm:$0xff]
    %v86 = vld [vmem:[%s0 + $0x29] sm:$0xff]
    %v87 = vld [vmem:[%s0 + $0x31] sm:$0xff]
    %v88 = vld [vmem:[%s0 + $0x39] sm:$0xff]
    %v89 = vld [vmem:[%s0 + $0x41] sm:$0xff]
    %v90 = vld [vmem:[%s0 + $0x49] sm:$0xff]
    %v91 = vld [vmem:[%s0 + $0x51] sm:$0xff]
    %v92 = vld [vmem:[%s0 + $0x59] sm:$0xff]
    %v93 = vld [vmem:[%s0 + $0x61] sm:$0xff]
    %v94 = vld [vmem:[%s0 + $0x69] sm:$0xff]
    %v95 = vld [vmem:[%s0 + $0x71] sm:$0xff]
    %v96 = vld [vmem:[%s0 + $0x79] sm:$0xff]
    %v97 = vld [vmem:[%s0 + $0x81] sm:$0xff]
    %v98 = vld [vmem:[%s0 + $0x89] sm:$0xff]
    %v99 = vld [vmem:[%s0 + $0x91] sm:$0xff]
    %v100 = vld [vmem:[%s0 + $0x99] sm:$0xff]
    %v101 = vld [vmem:[%s0 + $0xa1] sm:$0xff]
    %v102 = vld [vmem:[%s0 + $0xa9] sm:$0xff]
    %v103 = vld [vmem:[%s0 + $0xb1] sm:$0xff]
    %v104 = vld [vmem:[%s0 + $0xb9] sm:$0xff]
    %v105 = vld [vmem:[%s0 + $0xc1] sm:$0xff]
    %v106 = vld [vmem:[%s0 + $0xc9] sm:$0xff]
    %v107 = vld [vmem:[%s0 + $0xd1] sm:$0xff]
    %v108 = vld [vmem:[%s0 + $0xd9] sm:$0xff]
    %v109 = vld [vmem:[%s0 + $0xe1] sm:$0xff]
    %v110 = vld [vmem:[%s0 + $0xe9] sm:$0xff]
    %v111 = vld [vmem:[%s0 + $0xf1] sm:$0xff]
    %v112 = vld [vmem:[%s0 + $0xf9] sm:$0xff]
    %v113 = vld [vmem:[%s0 + $0x101] sm:$0xff]
    %v114 = vld [vmem:[%s0 + $0x109] sm:$0x3f]
    %s115 = scalar_lea.vmem %s1, 64
    %v116 = vld [vmem:[%s115] sm:$0xff]
    %v117 = vld [vmem:[%s115 + $0x8] sm:$0xff]
    %v118 = vld [vmem:[%s115 + $0x10] sm:$0xff]
    %v119 = vld [vmem:[%s115 + $0x18] sm:$0xff]
    %v120 = vld [vmem:[%s115 + $0x20] sm:$0xff]
    %v121 = vld [vmem:[%s115 + $0x28] sm:$0xff]
    %v122 = vld [vmem:[%s115 + $0x30] sm:$0xff]
    %v123 = vld [vmem:[%s115 + $0x38] sm:$0xff]
    %vm124 = vcmask 523264
    %v126 = vsel %vm124, %v81, 0
    %v129 = vsel %vm124, %v82, 0
    %v132 = vsel %vm124, %v83, 0
    %v135 = vsel %vm124, %v84, 0
    %v138 = vsel %vm124, %v85, 0
    %v141 = vsel %vm124, %v86, 0
    %v144 = vsel %vm124, %v87, 0
    %v147 = vsel %vm124, %v88, 0
    %v150 = vsel %vm124, %v89, 0
    %v153 = vsel %vm124, %v90, 0
    %v156 = vsel %vm124, %v91, 0
    %v159 = vsel %vm124, %v92, 0
    %v162 = vsel %vm124, %v93, 0
    %v165 = vsel %vm124, %v94, 0
    %v168 = vsel %vm124, %v95, 0
    %v171 = vsel %vm124, %v96, 0
    %v174 = vsel %vm124, %v97, 0
    %v177 = vsel %vm124, %v98, 0
    %v180 = vsel %vm124, %v99, 0
    %v183 = vsel %vm124, %v100, 0
    %v186 = vsel %vm124, %v101, 0
    %v189 = vsel %vm124, %v102, 0
    %v192 = vsel %vm124, %v103, 0
    %v195 = vsel %vm124, %v104, 0
    %v198 = vsel %vm124, %v105, 0
    %v201 = vsel %vm124, %v106, 0
    %v204 = vsel %vm124, %v107, 0
    %v207 = vsel %vm124, %v108, 0
    %v210 = vsel %vm124, %v109, 0
    %v213 = vsel %vm124, %v110, 0
    %v216 = vsel %vm124, %v111, 0
    %v219 = vsel %vm124, %v112, 0
    %v222 = vsel %vm124, %v113, 0
    %v225 = vsel %vm124, %v114, 0
    %227 = vmatprep.subr.mxu0 0.0
    %228 = vmatpush1.msra.mxu0 0.0
    %229 = vmatprep.subr.mxu0 0.0
    %230 = vmatpush1.msra.mxu0 0.0
    %231 = vmatprep.subr.mxu0 0.0
    %232 = vmatpush1.msra.mxu0 0.0
    %233 = vmatprep.subr.mxu0 0.0
    %234 = vmatpush1.msra.mxu0 0.0
    %235 = vmatprep.subr.mxu0 0.0
    %236 = vmatpush1.msra.mxu0 0.0
    %237 = vmatprep.subr.mxu0 0.0
    %238 = vmatpush1.msra.mxu0 0.0
    %239 = vmatprep.subr.mxu0 0.0
    %240 = vmatpush1.msra.mxu0 0.0
    %241 = vmatprep.subr.mxu0 0.0
    %242 = vmatpush1.msra.mxu0 0.0
    %243 = vmatprep.subr.mxu0 0.0
    %244 = vmatpush1.msra.mxu0 %v123
    %245 = vmatprep.subr.mxu0 0.0
    %246 = vmatpush1.msra.mxu0 %v122
    %247 = vmatprep.subr.mxu0 0.0
    %248 = vmatpush1.msra.mxu0 %v121
    %249 = vmatprep.subr.mxu0 0.0
    %250 = vmatpush1.msra.mxu0 %v120
    %251 = vmatprep.subr.mxu0 0.0
    %252 = vmatpush1.msra.mxu0 %v119
    %253 = vmatprep.subr.mxu0 0.0
    %254 = vmatpush1.msra.mxu0 %v118
    %255 = vmatprep.subr.mxu0 0.0
    %256 = vmatpush1.msra.mxu0 %v117
    %257 = vmatprep.subr.mxu0 0.0
    %258 = vmatpush1.msra.mxu0 %v116
    %259 = vmatprep.subr.mxu0 0.0
    %260 = vmatpush2.msra.mxu0 0.0
    %261 = vmatprep.subr.mxu0 0.0
    %262 = vmatpush2.msra.mxu0 0.0
    %263 = vmatprep.subr.mxu0 0.0
    %264 = vmatpush2.msra.mxu0 0.0
    %265 = vmatprep.subr.mxu0 0.0
    %266 = vmatpush2.msra.mxu0 0.0
    %267 = vmatprep.subr.mxu0 0.0
    %268 = vmatpush2.msra.mxu0 0.0
    %269 = vmatprep.subr.mxu0 0.0
    %270 = vmatpush2.msra.mxu0 0.0
    %271 = vmatprep.subr.mxu0 0.0
    %272 = vmatpush2.msra.mxu0 0.0
    %273 = vmatprep.subr.mxu0 0.0
    %274 = vmatpush2.msra.mxu0 0.0
    %275 = vmatprep.subr.mxu0 0.0
    %276 = vmatpush2.msra.mxu0 0.0
    %277 = vmatprep.subr.mxu0 0.0
    %278 = vmatpush2.msra.mxu0 0.0
    %279 = vmatprep.subr.mxu0 0.0
    %280 = vmatpush2.msra.mxu0 0.0
    %281 = vmatprep.subr.mxu0 0.0
    %282 = vmatpush2.msra.mxu0 0.0
    %283 = vmatprep.subr.mxu0 0.0
    %284 = vmatpush2.msra.mxu0 0.0
    %285 = vmatprep.subr.mxu0 0.0
    %286 = vmatpush2.msra.mxu0 0.0
    %287 = vmatprep.subr.mxu0 0.0
    %288 = vmatpush2.msra.mxu0 0.0
    %289 = vmatprep.subr.mxu0 0.0
    %290 = vmatpush2.msra.mxu0 0.0
    %291 = vmatprep.mubr.f32.mxu0 0.0
    %292 = vmatmul.mubr.f32.gmra.mxu0 %v126
    %v293 = vpop.f32.mrf.mxu0
    %v294 = vadd.f32 0.0, %v293
    %v295 = vpop.f32.mrf.mxu0
    %296 = vmatprep.mubr.f32.mxu0 0.0
    %297 = vmatmul.mubr.f32.gmra.mxu0 %v129
    %v298 = vpop.f32.mrf.mxu0
    %v299 = vadd.f32 0.0, %v298
    %v300 = vpop.f32.mrf.mxu0
    %301 = vmatprep.mubr.f32.mxu0 0.0
    %302 = vmatmul.mubr.f32.gmra.mxu0 %v132
    %v303 = vpop.f32.mrf.mxu0
    %v304 = vadd.f32 0.0, %v303
    %v305 = vpop.f32.mrf.mxu0
    %306 = vmatprep.mubr.f32.mxu0 0.0
    %307 = vmatmul.mubr.f32.gmra.mxu0 %v135
    %v308 = vpop.f32.mrf.mxu0
    %v309 = vadd.f32 0.0, %v308
    %v310 = vpop.f32.mrf.mxu0
    %311 = vmatprep.mubr.f32.mxu0 0.0
    %312 = vmatmul.mubr.f32.gmra.mxu0 %v138
    %v313 = vpop.f32.mrf.mxu0
    %v314 = vadd.f32 0.0, %v313
    %v315 = vpop.f32.mrf.mxu0
    %316 = vmatprep.mubr.f32.mxu0 0.0
    %317 = vmatmul.mubr.f32.gmra.mxu0 %v141
    %v318 = vpop.f32.mrf.mxu0
    %v319 = vadd.f32 0.0, %v318
    %v320 = vpop.f32.mrf.mxu0
    %321 = vmatprep.mubr.f32.mxu0 0.0
    %322 = vmatmul.mubr.f32.gmra.mxu0 %v144
    %v323 = vpop.f32.mrf.mxu0
    %v324 = vadd.f32 0.0, %v323
    %v325 = vpop.f32.mrf.mxu0
    %326 = vmatprep.mubr.f32.mxu0 0.0
    %327 = vmatmul.mubr.f32.gmra.mxu0 %v147
    %v328 = vpop.f32.mrf.mxu0
    %v329 = vadd.f32 0.0, %v328
    %v330 = vpop.f32.mrf.mxu0
    %331 = vmatprep.mubr.f32.mxu0 0.0
    %332 = vmatmul.mubr.f32.gmra.mxu0 %v150
    %v333 = vpop.f32.mrf.mxu0
    %v334 = vadd.f32 0.0, %v333
    %v335 = vpop.f32.mrf.mxu0
    %336 = vmatprep.mubr.f32.mxu0 0.0
    %337 = vmatmul.mubr.f32.gmra.mxu0 %v153
    %v338 = vpop.f32.mrf.mxu0
    %v339 = vadd.f32 0.0, %v338
    %v340 = vpop.f32.mrf.mxu0
    %341 = vmatprep.mubr.f32.mxu0 0.0
    %342 = vmatmul.mubr.f32.gmra.mxu0 %v156
    %v343 = vpop.f32.mrf.mxu0
    %v344 = vadd.f32 0.0, %v343
    %v345 = vpop.f32.mrf.mxu0
    %346 = vmatprep.mubr.f32.mxu0 0.0
    %347 = vmatmul.mubr.f32.gmra.mxu0 %v159
    %v348 = vpop.f32.mrf.mxu0
    %v349 = vadd.f32 0.0, %v348
    %v350 = vpop.f32.mrf.mxu0
    %351 = vmatprep.mubr.f32.mxu0 0.0
    %352 = vmatmul.mubr.f32.gmra.mxu0 %v162
    %v353 = vpop.f32.mrf.mxu0
    %v354 = vadd.f32 0.0, %v353
    %v355 = vpop.f32.mrf.mxu0
    %356 = vmatprep.mubr.f32.mxu0 0.0
    %357 = vmatmul.mubr.f32.gmra.mxu0 %v165
    %v358 = vpop.f32.mrf.mxu0
    %v359 = vadd.f32 0.0, %v358
    %v360 = vpop.f32.mrf.mxu0
    %361 = vmatprep.mubr.f32.mxu0 0.0
    %362 = vmatmul.mubr.f32.gmra.mxu0 %v168
    %v363 = vpop.f32.mrf.mxu0
    %v364 = vadd.f32 0.0, %v363
    %v365 = vpop.f32.mrf.mxu0
    %366 = vmatprep.mubr.f32.mxu0 0.0
    %367 = vmatmul.mubr.f32.gmra.mxu0 %v171
    %v368 = vpop.f32.mrf.mxu0
    %v369 = vadd.f32 0.0, %v368
    %v370 = vpop.f32.mrf.mxu0
    %371 = vmatprep.mubr.f32.mxu0 0.0
    %372 = vmatmul.mubr.f32.gmra.mxu0 %v174
    %v373 = vpop.f32.mrf.mxu0
    %v374 = vadd.f32 0.0, %v373
    %v375 = vpop.f32.mrf.mxu0
    %376 = vmatprep.mubr.f32.mxu0 0.0
    %377 = vmatmul.mubr.f32.gmra.mxu0 %v177
    %v378 = vpop.f32.mrf.mxu0
    %v379 = vadd.f32 0.0, %v378
    %v380 = vpop.f32.mrf.mxu0
    %381 = vmatprep.mubr.f32.mxu0 0.0
    %382 = vmatmul.mubr.f32.gmra.mxu0 %v180
    %v383 = vpop.f32.mrf.mxu0
    %v384 = vadd.f32 0.0, %v383
    %v385 = vpop.f32.mrf.mxu0
    %386 = vmatprep.mubr.f32.mxu0 0.0
    %387 = vmatmul.mubr.f32.gmra.mxu0 %v183
    %v388 = vpop.f32.mrf.mxu0
    %v389 = vadd.f32 0.0, %v388
    %v390 = vpop.f32.mrf.mxu0
    %391 = vmatprep.mubr.f32.mxu0 0.0
    %392 = vmatmul.mubr.f32.gmra.mxu0 %v186
    %v393 = vpop.f32.mrf.mxu0
    %v394 = vadd.f32 0.0, %v393
    %v395 = vpop.f32.mrf.mxu0
    %396 = vmatprep.mubr.f32.mxu0 0.0
    %397 = vmatmul.mubr.f32.gmra.mxu0 %v189
    %v398 = vpop.f32.mrf.mxu0
    %v399 = vadd.f32 0.0, %v398
    %v400 = vpop.f32.mrf.mxu0
    %401 = vmatprep.mubr.f32.mxu0 0.0
    %402 = vmatmul.mubr.f32.gmra.mxu0 %v192
    %v403 = vpop.f32.mrf.mxu0
    %v404 = vadd.f32 0.0, %v403
    %v405 = vpop.f32.mrf.mxu0
    %406 = vmatprep.mubr.f32.mxu0 0.0
    %407 = vmatmul.mubr.f32.gmra.mxu0 %v195
    %v408 = vpop.f32.mrf.mxu0
    %v409 = vadd.f32 0.0, %v408
    %v410 = vpop.f32.mrf.mxu0
    %411 = vmatprep.mubr.f32.mxu0 0.0
    %412 = vmatmul.mubr.f32.gmra.mxu0 %v198
    %v413 = vpop.f32.mrf.mxu0
    %v414 = vadd.f32 0.0, %v413
    %v415 = vpop.f32.mrf.mxu0
    %416 = vmatprep.mubr.f32.mxu0 0.0
    %417 = vmatmul.mubr.f32.gmra.mxu0 %v201
    %v418 = vpop.f32.mrf.mxu0
    %v419 = vadd.f32 0.0, %v418
    %v420 = vpop.f32.mrf.mxu0
    %421 = vmatprep.mubr.f32.mxu0 0.0
    %422 = vmatmul.mubr.f32.gmra.mxu0 %v204
    %v423 = vpop.f32.mrf.mxu0
    %v424 = vadd.f32 0.0, %v423
    %v425 = vpop.f32.mrf.mxu0
    %426 = vmatprep.mubr.f32.mxu0 0.0
    %427 = vmatmul.mubr.f32.gmra.mxu0 %v207
    %v428 = vpop.f32.mrf.mxu0
    %v429 = vadd.f32 0.0, %v428
    %v430 = vpop.f32.mrf.mxu0
    %431 = vmatprep.mubr.f32.mxu0 0.0
    %432 = vmatmul.mubr.f32.gmra.mxu0 %v210
    %v433 = vpop.f32.mrf.mxu0
    %v434 = vadd.f32 0.0, %v433
    %v435 = vpop.f32.mrf.mxu0
    %436 = vmatprep.mubr.f32.mxu0 0.0
    %437 = vmatmul.mubr.f32.gmra.mxu0 %v213
    %v438 = vpop.f32.mrf.mxu0
    %v439 = vadd.f32 0.0, %v438
    %v440 = vpop.f32.mrf.mxu0
    %441 = vmatprep.mubr.f32.mxu0 0.0
    %442 = vmatmul.mubr.f32.gmra.mxu0 %v216
    %v443 = vpop.f32.mrf.mxu0
    %v444 = vadd.f32 0.0, %v443
    %v445 = vpop.f32.mrf.mxu0
    %446 = vmatprep.mubr.f32.mxu0 0.0
    %447 = vmatmul.mubr.f32.gmra.mxu0 %v219
    %v448 = vpop.f32.mrf.mxu0
    %v449 = vadd.f32 0.0, %v448
    %v450 = vpop.f32.mrf.mxu0
    %451 = vmatprep.mubr.f32.mxu0 0.0
    %452 = vmatmul.mubr.f32.gmra.mxu0 %v222
    %v453 = vpop.f32.mrf.mxu0
    %v454 = vadd.f32 0.0, %v453
    %v455 = vpop.f32.mrf.mxu0
    %456 = vmatprep.mubr.f32.mxu0 0.0
    %457 = vmatmul.mubr.f32.gmra.mxu0 %v225
    %v458 = vpop.f32.mrf.mxu0
    %v459 = vadd.f32 0.0, %v458
    %v460 = vpop.f32.mrf.mxu0
    %461 = vdwg.mxu0
    %v463 = vsel %vm124, %v39, 0
    %v466 = vsel %vm124, %v40, 0
    %v469 = vsel %vm124, %v41, 0
    %v472 = vsel %vm124, %v42, 0
    %v475 = vsel %vm124, %v43, 0
    %v478 = vsel %vm124, %v44, 0
    %v481 = vsel %vm124, %v45, 0
    %v484 = vsel %vm124, %v46, 0
    %v487 = vsel %vm124, %v47, 0
    %v490 = vsel %vm124, %v48, 0
    %v493 = vsel %vm124, %v49, 0
    %v496 = vsel %vm124, %v50, 0
    %v499 = vsel %vm124, %v51, 0
    %v502 = vsel %vm124, %v52, 0
    %v505 = vsel %vm124, %v53, 0
    %v508 = vsel %vm124, %v54, 0
    %v511 = vsel %vm124, %v55, 0
    %v514 = vsel %vm124, %v56, 0
    %v517 = vsel %vm124, %v57, 0
    %v520 = vsel %vm124, %v58, 0
    %v523 = vsel %vm124, %v59, 0
    %v526 = vsel %vm124, %v60, 0
    %v529 = vsel %vm124, %v61, 0
    %v532 = vsel %vm124, %v62, 0
    %v535 = vsel %vm124, %v63, 0
    %v538 = vsel %vm124, %v64, 0
    %v541 = vsel %vm124, %v65, 0
    %v544 = vsel %vm124, %v66, 0
    %v547 = vsel %vm124, %v67, 0
    %v550 = vsel %vm124, %v68, 0
    %v553 = vsel %vm124, %v69, 0
    %v556 = vsel %vm124, %v70, 0
    %v559 = vsel %vm124, %v71, 0
    %v562 = vsel %vm124, %v72, 0
    %564 = vmatprep.subr.mxu0 0.0
    %565 = vmatpush1.msra.mxu0 0.0
    %566 = vmatprep.subr.mxu0 0.0
    %567 = vmatpush1.msra.mxu0 0.0
    %568 = vmatprep.subr.mxu0 0.0
    %569 = vmatpush1.msra.mxu0 0.0
    %570 = vmatprep.subr.mxu0 0.0
    %571 = vmatpush1.msra.mxu0 0.0
    %572 = vmatprep.subr.mxu0 0.0
    %573 = vmatpush1.msra.mxu0 0.0
    %574 = vmatprep.subr.mxu0 0.0
    %575 = vmatpush1.msra.mxu0 0.0
    %576 = vmatprep.subr.mxu0 0.0
    %577 = vmatpush1.msra.mxu0 0.0
    %578 = vmatprep.subr.mxu0 0.0
    %579 = vmatpush1.msra.mxu0 0.0
    %580 = vmatprep.subr.mxu0 0.0
    %581 = vmatpush1.msra.mxu0 %v80
    %582 = vmatprep.subr.mxu0 0.0
    %583 = vmatpush1.msra.mxu0 %v79
    %584 = vmatprep.subr.mxu0 0.0
    %585 = vmatpush1.msra.mxu0 %v78
    %586 = vmatprep.subr.mxu0 0.0
    %587 = vmatpush1.msra.mxu0 %v77
    %588 = vmatprep.subr.mxu0 0.0
    %589 = vmatpush1.msra.mxu0 %v76
    %590 = vmatprep.subr.mxu0 0.0
    %591 = vmatpush1.msra.mxu0 %v75
    %592 = vmatprep.subr.mxu0 0.0
    %593 = vmatpush1.msra.mxu0 %v74
    %594 = vmatprep.subr.mxu0 0.0
    %595 = vmatpush1.msra.mxu0 %v73
    %596 = vmatprep.subr.mxu0 0.0
    %597 = vmatpush2.msra.mxu0 0.0
    %598 = vmatprep.subr.mxu0 0.0
    %599 = vmatpush2.msra.mxu0 0.0
    %600 = vmatprep.subr.mxu0 0.0
    %601 = vmatpush2.msra.mxu0 0.0
    %602 = vmatprep.subr.mxu0 0.0
    %603 = vmatpush2.msra.mxu0 0.0
    %604 = vmatprep.subr.mxu0 0.0
    %605 = vmatpush2.msra.mxu0 0.0
    %606 = vmatprep.subr.mxu0 0.0
    %607 = vmatpush2.msra.mxu0 0.0
    %608 = vmatprep.subr.mxu0 0.0
    %609 = vmatpush2.msra.mxu0 0.0
    %610 = vmatprep.subr.mxu0 0.0
    %611 = vmatpush2.msra.mxu0 0.0
    %612 = vmatprep.subr.mxu0 0.0
    %613 = vmatpush2.msra.mxu0 0.0
    %614 = vmatprep.subr.mxu0 0.0
    %615 = vmatpush2.msra.mxu0 0.0
    %616 = vmatprep.subr.mxu0 0.0
    %617 = vmatpush2.msra.mxu0 0.0
    %618 = vmatprep.subr.mxu0 0.0
    %619 = vmatpush2.msra.mxu0 0.0
    %620 = vmatprep.subr.mxu0 0.0
    %621 = vmatpush2.msra.mxu0 0.0
    %622 = vmatprep.subr.mxu0 0.0
    %623 = vmatpush2.msra.mxu0 0.0
    %624 = vmatprep.subr.mxu0 0.0
    %625 = vmatpush2.msra.mxu0 0.0
    %626 = vmatprep.subr.mxu0 0.0
    %627 = vmatpush2.msra.mxu0 0.0
    %628 = vmatprep.mubr.f32.mxu0 0.0
    %629 = vmatmul.mubr.f32.gmra.mxu0 %v463
    %v630 = vpop.f32.mrf.mxu0
    %v631 = vadd.f32 %v294, %v630
    %v632 = vpop.f32.mrf.mxu0
    %633 = vmatprep.mubr.f32.mxu0 0.0
    %634 = vmatmul.mubr.f32.gmra.mxu0 %v466
    %v635 = vpop.f32.mrf.mxu0
    %v636 = vadd.f32 %v299, %v635
    %v637 = vpop.f32.mrf.mxu0
    %638 = vmatprep.mubr.f32.mxu0 0.0
    %639 = vmatmul.mubr.f32.gmra.mxu0 %v469
    %v640 = vpop.f32.mrf.mxu0
    %v641 = vadd.f32 %v304, %v640
    %v642 = vpop.f32.mrf.mxu0
    %643 = vmatprep.mubr.f32.mxu0 0.0
    %644 = vmatmul.mubr.f32.gmra.mxu0 %v472
    %v645 = vpop.f32.mrf.mxu0
    %v646 = vadd.f32 %v309, %v645
    %v647 = vpop.f32.mrf.mxu0
    %648 = vmatprep.mubr.f32.mxu0 0.0
    %649 = vmatmul.mubr.f32.gmra.mxu0 %v475
    %v650 = vpop.f32.mrf.mxu0
    %v651 = vadd.f32 %v314, %v650
    %v652 = vpop.f32.mrf.mxu0
    %653 = vmatprep.mubr.f32.mxu0 0.0
    %654 = vmatmul.mubr.f32.gmra.mxu0 %v478
    %v655 = vpop.f32.mrf.mxu0
    %v656 = vadd.f32 %v319, %v655
    %v657 = vpop.f32.mrf.mxu0
    %658 = vmatprep.mubr.f32.mxu0 0.0
    %659 = vmatmul.mubr.f32.gmra.mxu0 %v481
    %v660 = vpop.f32.mrf.mxu0
    %v661 = vadd.f32 %v324, %v660
    %v662 = vpop.f32.mrf.mxu0
    %663 = vmatprep.mubr.f32.mxu0 0.0
    %664 = vmatmul.mubr.f32.gmra.mxu0 %v484
    %v665 = vpop.f32.mrf.mxu0
    %v666 = vadd.f32 %v329, %v665
    %v667 = vpop.f32.mrf.mxu0
    %668 = vmatprep.mubr.f32.mxu0 0.0
    %669 = vmatmul.mubr.f32.gmra.mxu0 %v487
    %v670 = vpop.f32.mrf.mxu0
    %v671 = vadd.f32 %v334, %v670
    %v672 = vpop.f32.mrf.mxu0
    %673 = vmatprep.mubr.f32.mxu0 0.0
    %674 = vmatmul.mubr.f32.gmra.mxu0 %v490
    %v675 = vpop.f32.mrf.mxu0
    %v676 = vadd.f32 %v339, %v675
    %v677 = vpop.f32.mrf.mxu0
    %678 = vmatprep.mubr.f32.mxu0 0.0
    %679 = vmatmul.mubr.f32.gmra.mxu0 %v493
    %v680 = vpop.f32.mrf.mxu0
    %v681 = vadd.f32 %v344, %v680
    %v682 = vpop.f32.mrf.mxu0
    %683 = vmatprep.mubr.f32.mxu0 0.0
    %684 = vmatmul.mubr.f32.gmra.mxu0 %v496
    %v685 = vpop.f32.mrf.mxu0
    %v686 = vadd.f32 %v349, %v685
    %v687 = vpop.f32.mrf.mxu0
    %688 = vmatprep.mubr.f32.mxu0 0.0
    %689 = vmatmul.mubr.f32.gmra.mxu0 %v499
    %v690 = vpop.f32.mrf.mxu0
    %v691 = vadd.f32 %v354, %v690
    %v692 = vpop.f32.mrf.mxu0
    %693 = vmatprep.mubr.f32.mxu0 0.0
    %694 = vmatmul.mubr.f32.gmra.mxu0 %v502
    %v695 = vpop.f32.mrf.mxu0
    %v696 = vadd.f32 %v359, %v695
    %v697 = vpop.f32.mrf.mxu0
    %698 = vmatprep.mubr.f32.mxu0 0.0
    %699 = vmatmul.mubr.f32.gmra.mxu0 %v505
    %v700 = vpop.f32.mrf.mxu0
    %v701 = vadd.f32 %v364, %v700
    %v702 = vpop.f32.mrf.mxu0
    %703 = vmatprep.mubr.f32.mxu0 0.0
    %704 = vmatmul.mubr.f32.gmra.mxu0 %v508
    %v705 = vpop.f32.mrf.mxu0
    %v706 = vadd.f32 %v369, %v705
    %v707 = vpop.f32.mrf.mxu0
    %708 = vmatprep.mubr.f32.mxu0 0.0
    %709 = vmatmul.mubr.f32.gmra.mxu0 %v511
    %v710 = vpop.f32.mrf.mxu0
    %v711 = vadd.f32 %v374, %v710
    %v712 = vpop.f32.mrf.mxu0
    %713 = vmatprep.mubr.f32.mxu0 0.0
    %714 = vmatmul.mubr.f32.gmra.mxu0 %v514
    %v715 = vpop.f32.mrf.mxu0
    %v716 = vadd.f32 %v379, %v715
    %v717 = vpop.f32.mrf.mxu0
    %718 = vmatprep.mubr.f32.mxu0 0.0
    %719 = vmatmul.mubr.f32.gmra.mxu0 %v517
    %v720 = vpop.f32.mrf.mxu0
    %v721 = vadd.f32 %v384, %v720
    %v722 = vpop.f32.mrf.mxu0
    %723 = vmatprep.mubr.f32.mxu0 0.0
    %724 = vmatmul.mubr.f32.gmra.mxu0 %v520
    %v725 = vpop.f32.mrf.mxu0
    %v726 = vadd.f32 %v389, %v725
    %v727 = vpop.f32.mrf.mxu0
    %728 = vmatprep.mubr.f32.mxu0 0.0
    %729 = vmatmul.mubr.f32.gmra.mxu0 %v523
    %v730 = vpop.f32.mrf.mxu0
    %v731 = vadd.f32 %v394, %v730
    %v732 = vpop.f32.mrf.mxu0
    %733 = vmatprep.mubr.f32.mxu0 0.0
    %734 = vmatmul.mubr.f32.gmra.mxu0 %v526
    %v735 = vpop.f32.mrf.mxu0
    %v736 = vadd.f32 %v399, %v735
    %v737 = vpop.f32.mrf.mxu0
    %738 = vmatprep.mubr.f32.mxu0 0.0
    %739 = vmatmul.mubr.f32.gmra.mxu0 %v529
    %v740 = vpop.f32.mrf.mxu0
    %v741 = vadd.f32 %v404, %v740
    %v742 = vpop.f32.mrf.mxu0
    %743 = vmatprep.mubr.f32.mxu0 0.0
    %744 = vmatmul.mubr.f32.gmra.mxu0 %v532
    %v745 = vpop.f32.mrf.mxu0
    %v746 = vadd.f32 %v409, %v745
    %v747 = vpop.f32.mrf.mxu0
    %748 = vmatprep.mubr.f32.mxu0 0.0
    %749 = vmatmul.mubr.f32.gmra.mxu0 %v535
    %v750 = vpop.f32.mrf.mxu0
    %v751 = vadd.f32 %v414, %v750
    %v752 = vpop.f32.mrf.mxu0
    %753 = vmatprep.mubr.f32.mxu0 0.0
    %754 = vmatmul.mubr.f32.gmra.mxu0 %v538
    %v755 = vpop.f32.mrf.mxu0
    %v756 = vadd.f32 %v419, %v755
    %v757 = vpop.f32.mrf.mxu0
    %758 = vmatprep.mubr.f32.mxu0 0.0
    %759 = vmatmul.mubr.f32.gmra.mxu0 %v541
    %v760 = vpop.f32.mrf.mxu0
    %v761 = vadd.f32 %v424, %v760
    %v762 = vpop.f32.mrf.mxu0
    %763 = vmatprep.mubr.f32.mxu0 0.0
    %764 = vmatmul.mubr.f32.gmra.mxu0 %v544
    %v765 = vpop.f32.mrf.mxu0
    %v766 = vadd.f32 %v429, %v765
    %v767 = vpop.f32.mrf.mxu0
    %768 = vmatprep.mubr.f32.mxu0 0.0
    %769 = vmatmul.mubr.f32.gmra.mxu0 %v547
    %v770 = vpop.f32.mrf.mxu0
    %v771 = vadd.f32 %v434, %v770
    %v772 = vpop.f32.mrf.mxu0
    %773 = vmatprep.mubr.f32.mxu0 0.0
    %774 = vmatmul.mubr.f32.gmra.mxu0 %v550
    %v775 = vpop.f32.mrf.mxu0
    %v776 = vadd.f32 %v439, %v775
    %v777 = vpop.f32.mrf.mxu0
    %778 = vmatprep.mubr.f32.mxu0 0.0
    %779 = vmatmul.mubr.f32.gmra.mxu0 %v553
    %v780 = vpop.f32.mrf.mxu0
    %v781 = vadd.f32 %v444, %v780
    %v782 = vpop.f32.mrf.mxu0
    %783 = vmatprep.mubr.f32.mxu0 0.0
    %784 = vmatmul.mubr.f32.gmra.mxu0 %v556
    %v785 = vpop.f32.mrf.mxu0
    %v786 = vadd.f32 %v449, %v785
    %v787 = vpop.f32.mrf.mxu0
    %788 = vmatprep.mubr.f32.mxu0 0.0
    %789 = vmatmul.mubr.f32.gmra.mxu0 %v559
    %v790 = vpop.f32.mrf.mxu0
    %v791 = vadd.f32 %v454, %v790
    %v792 = vpop.f32.mrf.mxu0
    %793 = vmatprep.mubr.f32.mxu0 0.0
    %794 = vmatmul.mubr.f32.gmra.mxu0 %v562
    %v795 = vpop.f32.mrf.mxu0
    %v796 = vadd.f32 %v459, %v795
    %v797 = vpop.f32.mrf.mxu0
    %798 = vdwg.mxu0
    %v799 = vld [vmem:[%s0 + $0x2] sm:$0xff]
    %v800 = vld [vmem:[%s0 + $0xa] sm:$0xff]
    %v801 = vld [vmem:[%s0 + $0x12] sm:$0xff]
    %v802 = vld [vmem:[%s0 + $0x1a] sm:$0xff]
    %v803 = vld [vmem:[%s0 + $0x22] sm:$0xff]
    %v804 = vld [vmem:[%s0 + $0x2a] sm:$0xff]
    %v805 = vld [vmem:[%s0 + $0x32] sm:$0xff]
    %v806 = vld [vmem:[%s0 + $0x3a] sm:$0xff]
    %v807 = vld [vmem:[%s0 + $0x42] sm:$0xff]
    %v808 = vld [vmem:[%s0 + $0x4a] sm:$0xff]
    %v809 = vld [vmem:[%s0 + $0x52] sm:$0xff]
    %v810 = vld [vmem:[%s0 + $0x5a] sm:$0xff]
    %v811 = vld [vmem:[%s0 + $0x62] sm:$0xff]
    %v812 = vld [vmem:[%s0 + $0x6a] sm:$0xff]
    %v813 = vld [vmem:[%s0 + $0x72] sm:$0xff]
    %v814 = vld [vmem:[%s0 + $0x7a] sm:$0xff]
    %v815 = vld [vmem:[%s0 + $0x82] sm:$0xff]
    %v816 = vld [vmem:[%s0 + $0x8a] sm:$0xff]
    %v817 = vld [vmem:[%s0 + $0x92] sm:$0xff]
    %v818 = vld [vmem:[%s0 + $0x9a] sm:$0xff]
    %v819 = vld [vmem:[%s0 + $0xa2] sm:$0xff]
    %v820 = vld [vmem:[%s0 + $0xaa] sm:$0xff]
    %v821 = vld [vmem:[%s0 + $0xb2] sm:$0xff]
    %v822 = vld [vmem:[%s0 + $0xba] sm:$0xff]
    %v823 = vld [vmem:[%s0 + $0xc2] sm:$0xff]
    %v824 = vld [vmem:[%s0 + $0xca] sm:$0xff]
    %v825 = vld [vmem:[%s0 + $0xd2] sm:$0xff]
    %v826 = vld [vmem:[%s0 + $0xda] sm:$0xff]
    %v827 = vld [vmem:[%s0 + $0xe2] sm:$0xff]
    %v828 = vld [vmem:[%s0 + $0xea] sm:$0xff]
    %v829 = vld [vmem:[%s0 + $0xf2] sm:$0xff]
    %v830 = vld [vmem:[%s0 + $0xfa] sm:$0xff]
    %v831 = vld [vmem:[%s0 + $0x102] sm:$0xff]
    %v832 = vld [vmem:[%s0 + $0x10a] sm:$0x3f]
    %s833 = scalar_lea.vmem %s1, 128
    %v834 = vld [vmem:[%s833] sm:$0xff]
    %v835 = vld [vmem:[%s833 + $0x8] sm:$0xff]
    %v836 = vld [vmem:[%s833 + $0x10] sm:$0xff]
    %v837 = vld [vmem:[%s833 + $0x18] sm:$0xff]
    %v838 = vld [vmem:[%s833 + $0x20] sm:$0xff]
    %v839 = vld [vmem:[%s833 + $0x28] sm:$0xff]
    %v840 = vld [vmem:[%s833 + $0x30] sm:$0xff]
    %v841 = vld [vmem:[%s833 + $0x38] sm:$0xff]
    %v843 = vsel %vm124, %v799, 0
    %v846 = vsel %vm124, %v800, 0
    %v849 = vsel %vm124, %v801, 0
    %v852 = vsel %vm124, %v802, 0
    %v855 = vsel %vm124, %v803, 0
    %v858 = vsel %vm124, %v804, 0
    %v861 = vsel %vm124, %v805, 0
    %v864 = vsel %vm124, %v806, 0
    %v867 = vsel %vm124, %v807, 0
    %v870 = vsel %vm124, %v808, 0
    %v873 = vsel %vm124, %v809, 0
    %v876 = vsel %vm124, %v810, 0
    %v879 = vsel %vm124, %v811, 0
    %v882 = vsel %vm124, %v812, 0
    %v885 = vsel %vm124, %v813, 0
    %v888 = vsel %vm124, %v814, 0
    %v891 = vsel %vm124, %v815, 0
    %v894 = vsel %vm124, %v816, 0
    %v897 = vsel %vm124, %v817, 0
    %v900 = vsel %vm124, %v818, 0
    %v903 = vsel %vm124, %v819, 0
    %v906 = vsel %vm124, %v820, 0
    %v909 = vsel %vm124, %v821, 0
    %v912 = vsel %vm124, %v822, 0
    %v915 = vsel %vm124, %v823, 0
    %v918 = vsel %vm124, %v824, 0
    %v921 = vsel %vm124, %v825, 0
    %v924 = vsel %vm124, %v826, 0
    %v927 = vsel %vm124, %v827, 0
    %v930 = vsel %vm124, %v828, 0
    %v933 = vsel %vm124, %v829, 0
    %v936 = vsel %vm124, %v830, 0
    %v939 = vsel %vm124, %v831, 0
    %v942 = vsel %vm124, %v832, 0
    %944 = vmatprep.subr.mxu0 0.0
    %945 = vmatpush1.msra.mxu0 0.0
    %946 = vmatprep.subr.mxu0 0.0
    %947 = vmatpush1.msra.mxu0 0.0
    %948 = vmatprep.subr.mxu0 0.0
    %949 = vmatpush1.msra.mxu0 0.0
    %950 = vmatprep.subr.mxu0 0.0
    %951 = vmatpush1.msra.mxu0 0.0
    %952 = vmatprep.subr.mxu0 0.0
    %953 = vmatpush1.msra.mxu0 0.0
    %954 = vmatprep.subr.mxu0 0.0
    %955 = vmatpush1.msra.mxu0 0.0
    %956 = vmatprep.subr.mxu0 0.0
    %957 = vmatpush1.msra.mxu0 0.0
    %958 = vmatprep.subr.mxu0 0.0
    %959 = vmatpush1.msra.mxu0 0.0
    %960 = vmatprep.subr.mxu0 0.0
    %961 = vmatpush1.msra.mxu0 %v841
    %962 = vmatprep.subr.mxu0 0.0
    %963 = vmatpush1.msra.mxu0 %v840
    %964 = vmatprep.subr.mxu0 0.0
    %965 = vmatpush1.msra.mxu0 %v839
    %966 = vmatprep.subr.mxu0 0.0
    %967 = vmatpush1.msra.mxu0 %v838
    %968 = vmatprep.subr.mxu0 0.0
    %969 = vmatpush1.msra.mxu0 %v837
    %970 = vmatprep.subr.mxu0 0.0
    %971 = vmatpush1.msra.mxu0 %v836
    %972 = vmatprep.subr.mxu0 0.0
    %973 = vmatpush1.msra.mxu0 %v835
    %974 = vmatprep.subr.mxu0 0.0
    %975 = vmatpush1.msra.mxu0 %v834
    %976 = vmatprep.subr.mxu0 0.0
    %977 = vmatpush2.msra.mxu0 0.0
    %978 = vmatprep.subr.mxu0 0.0
    %979 = vmatpush2.msra.mxu0 0.0
    %980 = vmatprep.subr.mxu0 0.0
    %981 = vmatpush2.msra.mxu0 0.0
    %982 = vmatprep.subr.mxu0 0.0
    %983 = vmatpush2.msra.mxu0 0.0
    %984 = vmatprep.subr.mxu0 0.0
    %985 = vmatpush2.msra.mxu0 0.0
    %986 = vmatprep.subr.mxu0 0.0
    %987 = vmatpush2.msra.mxu0 0.0
    %988 = vmatprep.subr.mxu0 0.0
    %989 = vmatpush2.msra.mxu0 0.0
    %990 = vmatprep.subr.mxu0 0.0
    %991 = vmatpush2.msra.mxu0 0.0
    %992 = vmatprep.subr.mxu0 0.0
    %993 = vmatpush2.msra.mxu0 0.0
    %994 = vmatprep.subr.mxu0 0.0
    %995 = vmatpush2.msra.mxu0 0.0
    %996 = vmatprep.subr.mxu0 0.0
    %997 = vmatpush2.msra.mxu0 0.0
    %998 = vmatprep.subr.mxu0 0.0
    %999 = vmatpush2.msra.mxu0 0.0
    %1000 = vmatprep.subr.mxu0 0.0
    %1001 = vmatpush2.msra.mxu0 0.0
    %1002 = vmatprep.subr.mxu0 0.0
    %1003 = vmatpush2.msra.mxu0 0.0
    %1004 = vmatprep.subr.mxu0 0.0
    %1005 = vmatpush2.msra.mxu0 0.0
    %1006 = vmatprep.subr.mxu0 0.0
    %1007 = vmatpush2.msra.mxu0 0.0
    %1008 = vmatprep.mubr.f32.mxu0 0.0
    %1009 = vmatmul.mubr.f32.gmra.mxu0 %v843
    %v1010 = vpop.f32.mrf.mxu0
    %v1011 = vadd.f32 0.0, %v1010
    %v1012 = vpop.f32.mrf.mxu0
    %1013 = vmatprep.mubr.f32.mxu0 0.0
    %1014 = vmatmul.mubr.f32.gmra.mxu0 %v846
    %v1015 = vpop.f32.mrf.mxu0
    %v1016 = vadd.f32 0.0, %v1015
    %v1017 = vpop.f32.mrf.mxu0
    %1018 = vmatprep.mubr.f32.mxu0 0.0
    %1019 = vmatmul.mubr.f32.gmra.mxu0 %v849
    %v1020 = vpop.f32.mrf.mxu0
    %v1021 = vadd.f32 0.0, %v1020
    %v1022 = vpop.f32.mrf.mxu0
    %1023 = vmatprep.mubr.f32.mxu0 0.0
    %1024 = vmatmul.mubr.f32.gmra.mxu0 %v852
    %v1025 = vpop.f32.mrf.mxu0
    %v1026 = vadd.f32 0.0, %v1025
    %v1027 = vpop.f32.mrf.mxu0
    %1028 = vmatprep.mubr.f32.mxu0 0.0
    %1029 = vmatmul.mubr.f32.gmra.mxu0 %v855
    %v1030 = vpop.f32.mrf.mxu0
    %v1031 = vadd.f32 0.0, %v1030
    %v1032 = vpop.f32.mrf.mxu0
    %1033 = vmatprep.mubr.f32.mxu0 0.0
    %1034 = vmatmul.mubr.f32.gmra.mxu0 %v858
    %v1035 = vpop.f32.mrf.mxu0
    %v1036 = vadd.f32 0.0, %v1035
    %v1037 = vpop.f32.mrf.mxu0
    %1038 = vmatprep.mubr.f32.mxu0 0.0
    %1039 = vmatmul.mubr.f32.gmra.mxu0 %v861
    %v1040 = vpop.f32.mrf.mxu0
    %v1041 = vadd.f32 0.0, %v1040
    %v1042 = vpop.f32.mrf.mxu0
    %1043 = vmatprep.mubr.f32.mxu0 0.0
    %1044 = vmatmul.mubr.f32.gmra.mxu0 %v864
    %v1045 = vpop.f32.mrf.mxu0
    %v1046 = vadd.f32 0.0, %v1045
    %v1047 = vpop.f32.mrf.mxu0
    %1048 = vmatprep.mubr.f32.mxu0 0.0
    %1049 = vmatmul.mubr.f32.gmra.mxu0 %v867
    %v1050 = vpop.f32.mrf.mxu0
    %v1051 = vadd.f32 0.0, %v1050
    %v1052 = vpop.f32.mrf.mxu0
    %1053 = vmatprep.mubr.f32.mxu0 0.0
    %1054 = vmatmul.mubr.f32.gmra.mxu0 %v870
    %v1055 = vpop.f32.mrf.mxu0
    %v1056 = vadd.f32 0.0, %v1055
    %v1057 = vpop.f32.mrf.mxu0
    %1058 = vmatprep.mubr.f32.mxu0 0.0
    %1059 = vmatmul.mubr.f32.gmra.mxu0 %v873
    %v1060 = vpop.f32.mrf.mxu0
    %v1061 = vadd.f32 0.0, %v1060
    %v1062 = vpop.f32.mrf.mxu0
    %1063 = vmatprep.mubr.f32.mxu0 0.0
    %1064 = vmatmul.mubr.f32.gmra.mxu0 %v876
    %v1065 = vpop.f32.mrf.mxu0
    %v1066 = vadd.f32 0.0, %v1065
    %v1067 = vpop.f32.mrf.mxu0
    %1068 = vmatprep.mubr.f32.mxu0 0.0
    %1069 = vmatmul.mubr.f32.gmra.mxu0 %v879
    %v1070 = vpop.f32.mrf.mxu0
    %v1071 = vadd.f32 0.0, %v1070
    %v1072 = vpop.f32.mrf.mxu0
    %1073 = vmatprep.mubr.f32.mxu0 0.0
    %1074 = vmatmul.mubr.f32.gmra.mxu0 %v882
    %v1075 = vpop.f32.mrf.mxu0
    %v1076 = vadd.f32 0.0, %v1075
    %v1077 = vpop.f32.mrf.mxu0
    %1078 = vmatprep.mubr.f32.mxu0 0.0
    %1079 = vmatmul.mubr.f32.gmra.mxu0 %v885
    %v1080 = vpop.f32.mrf.mxu0
    %v1081 = vadd.f32 0.0, %v1080
    %v1082 = vpop.f32.mrf.mxu0
    %1083 = vmatprep.mubr.f32.mxu0 0.0
    %1084 = vmatmul.mubr.f32.gmra.mxu0 %v888
    %v1085 = vpop.f32.mrf.mxu0
    %v1086 = vadd.f32 0.0, %v1085
    %v1087 = vpop.f32.mrf.mxu0
    %1088 = vmatprep.mubr.f32.mxu0 0.0
    %1089 = vmatmul.mubr.f32.gmra.mxu0 %v891
    %v1090 = vpop.f32.mrf.mxu0
    %v1091 = vadd.f32 0.0, %v1090
    %v1092 = vpop.f32.mrf.mxu0
    %1093 = vmatprep.mubr.f32.mxu0 0.0
    %1094 = vmatmul.mubr.f32.gmra.mxu0 %v894
    %v1095 = vpop.f32.mrf.mxu0
    %v1096 = vadd.f32 0.0, %v1095
    %v1097 = vpop.f32.mrf.mxu0
    %1098 = vmatprep.mubr.f32.mxu0 0.0
    %1099 = vmatmul.mubr.f32.gmra.mxu0 %v897
    %v1100 = vpop.f32.mrf.mxu0
    %v1101 = vadd.f32 0.0, %v1100
    %v1102 = vpop.f32.mrf.mxu0
    %1103 = vmatprep.mubr.f32.mxu0 0.0
    %1104 = vmatmul.mubr.f32.gmra.mxu0 %v900
    %v1105 = vpop.f32.mrf.mxu0
    %v1106 = vadd.f32 0.0, %v1105
    %v1107 = vpop.f32.mrf.mxu0
    %1108 = vmatprep.mubr.f32.mxu0 0.0
    %1109 = vmatmul.mubr.f32.gmra.mxu0 %v903
    %v1110 = vpop.f32.mrf.mxu0
    %v1111 = vadd.f32 0.0, %v1110
    %v1112 = vpop.f32.mrf.mxu0
    %1113 = vmatprep.mubr.f32.mxu0 0.0
    %1114 = vmatmul.mubr.f32.gmra.mxu0 %v906
    %v1115 = vpop.f32.mrf.mxu0
    %v1116 = vadd.f32 0.0, %v1115
    %v1117 = vpop.f32.mrf.mxu0
    %1118 = vmatprep.mubr.f32.mxu0 0.0
    %1119 = vmatmul.mubr.f32.gmra.mxu0 %v909
    %v1120 = vpop.f32.mrf.mxu0
    %v1121 = vadd.f32 0.0, %v1120
    %v1122 = vpop.f32.mrf.mxu0
    %1123 = vmatprep.mubr.f32.mxu0 0.0
    %1124 = vmatmul.mubr.f32.gmra.mxu0 %v912
    %v1125 = vpop.f32.mrf.mxu0
    %v1126 = vadd.f32 0.0, %v1125
    %v1127 = vpop.f32.mrf.mxu0
    %1128 = vmatprep.mubr.f32.mxu0 0.0
    %1129 = vmatmul.mubr.f32.gmra.mxu0 %v915
    %v1130 = vpop.f32.mrf.mxu0
    %v1131 = vadd.f32 0.0, %v1130
    %v1132 = vpop.f32.mrf.mxu0
    %1133 = vmatprep.mubr.f32.mxu0 0.0
    %1134 = vmatmul.mubr.f32.gmra.mxu0 %v918
    %v1135 = vpop.f32.mrf.mxu0
    %v1136 = vadd.f32 0.0, %v1135
    %v1137 = vpop.f32.mrf.mxu0
    %1138 = vmatprep.mubr.f32.mxu0 0.0
    %1139 = vmatmul.mubr.f32.gmra.mxu0 %v921
    %v1140 = vpop.f32.mrf.mxu0
    %v1141 = vadd.f32 0.0, %v1140
    %v1142 = vpop.f32.mrf.mxu0
    %1143 = vmatprep.mubr.f32.mxu0 0.0
    %1144 = vmatmul.mubr.f32.gmra.mxu0 %v924
    %v1145 = vpop.f32.mrf.mxu0
    %v1146 = vadd.f32 0.0, %v1145
    %v1147 = vpop.f32.mrf.mxu0
    %1148 = vmatprep.mubr.f32.mxu0 0.0
    %1149 = vmatmul.mubr.f32.gmra.mxu0 %v927
    %v1150 = vpop.f32.mrf.mxu0
    %v1151 = vadd.f32 0.0, %v1150
    %v1152 = vpop.f32.mrf.mxu0
    %1153 = vmatprep.mubr.f32.mxu0 0.0
    %1154 = vmatmul.mubr.f32.gmra.mxu0 %v930
    %v1155 = vpop.f32.mrf.mxu0
    %v1156 = vadd.f32 0.0, %v1155
    %v1157 = vpop.f32.mrf.mxu0
    %1158 = vmatprep.mubr.f32.mxu0 0.0
    %1159 = vmatmul.mubr.f32.gmra.mxu0 %v933
    %v1160 = vpop.f32.mrf.mxu0
    %v1161 = vadd.f32 0.0, %v1160
    %v1162 = vpop.f32.mrf.mxu0
    %1163 = vmatprep.mubr.f32.mxu0 0.0
    %1164 = vmatmul.mubr.f32.gmra.mxu0 %v936
    %v1165 = vpop.f32.mrf.mxu0
    %v1166 = vadd.f32 0.0, %v1165
    %v1167 = vpop.f32.mrf.mxu0
    %1168 = vmatprep.mubr.f32.mxu0 0.0
    %1169 = vmatmul.mubr.f32.gmra.mxu0 %v939
    %v1170 = vpop.f32.mrf.mxu0
    %v1171 = vadd.f32 0.0, %v1170
    %v1172 = vpop.f32.mrf.mxu0
    %1173 = vmatprep.mubr.f32.mxu0 0.0
    %1174 = vmatmul.mubr.f32.gmra.mxu0 %v942
    %v1175 = vpop.f32.mrf.mxu0
    %v1176 = vadd.f32 0.0, %v1175
    %v1177 = vpop.f32.mrf.mxu0
    %1178 = vdwg.mxu0
    %v1179 = vadd.f32 %v631, %v1011
    %v1180 = vadd.f32 %v636, %v1016
    %v1181 = vadd.f32 %v641, %v1021
    %v1182 = vadd.f32 %v646, %v1026
    %v1183 = vadd.f32 %v651, %v1031
    %v1184 = vadd.f32 %v656, %v1036
    %v1185 = vadd.f32 %v661, %v1041
    %v1186 = vadd.f32 %v666, %v1046
    %v1187 = vadd.f32 %v671, %v1051
    %v1188 = vadd.f32 %v676, %v1056
    %v1189 = vadd.f32 %v681, %v1061
    %v1190 = vadd.f32 %v686, %v1066
    %v1191 = vadd.f32 %v691, %v1071
    %v1192 = vadd.f32 %v696, %v1076
    %v1193 = vadd.f32 %v701, %v1081
    %v1194 = vadd.f32 %v706, %v1086
    %v1195 = vadd.f32 %v711, %v1091
    %v1196 = vadd.f32 %v716, %v1096
    %v1197 = vadd.f32 %v721, %v1101
    %v1198 = vadd.f32 %v726, %v1106
    %v1199 = vadd.f32 %v731, %v1111
    %v1200 = vadd.f32 %v736, %v1116
    %v1201 = vadd.f32 %v741, %v1121
    %v1202 = vadd.f32 %v746, %v1126
    %v1203 = vadd.f32 %v751, %v1131
    %v1204 = vadd.f32 %v756, %v1136
    %v1205 = vadd.f32 %v761, %v1141
    %v1206 = vadd.f32 %v766, %v1146
    %v1207 = vadd.f32 %v771, %v1151
    %v1208 = vadd.f32 %v776, %v1156
    %v1209 = vadd.f32 %v781, %v1161
    %v1210 = vadd.f32 %v786, %v1166
    %v1211 = vadd.f32 %v791, %v1171
    %v1212 = vadd.f32 %v796, %v1176
    %v1213 = vld [vmem:[%s2] sm:$0x1]
    %v1215 = vlaneseq
    %v1216 = vshrl.u32 %v1215, 7
    %v1217 = vsub.s32 0, %v1216
    %v1218 = vrot.slane %v1213, %v1217
    %v1220 = vmul.f32 %v1179, %v1218
    %v1221 = vmul.f32 %v1180, %v1218
    %v1222 = vmul.f32 %v1181, %v1218
    %v1223 = vmul.f32 %v1182, %v1218
    %v1224 = vmul.f32 %v1183, %v1218
    %v1225 = vmul.f32 %v1184, %v1218
    %v1226 = vmul.f32 %v1185, %v1218
    %v1227 = vmul.f32 %v1186, %v1218
    %v1228 = vmul.f32 %v1187, %v1218
    %v1229 = vmul.f32 %v1188, %v1218
    %v1230 = vmul.f32 %v1189, %v1218
    %v1231 = vmul.f32 %v1190, %v1218
    %v1232 = vmul.f32 %v1191, %v1218
    %v1233 = vmul.f32 %v1192, %v1218
    %v1234 = vmul.f32 %v1193, %v1218
    %v1235 = vmul.f32 %v1194, %v1218
    %v1236 = vmul.f32 %v1195, %v1218
    %v1237 = vmul.f32 %v1196, %v1218
    %v1238 = vmul.f32 %v1197, %v1218
    %v1239 = vmul.f32 %v1198, %v1218
    %v1240 = vmul.f32 %v1199, %v1218
    %v1241 = vmul.f32 %v1200, %v1218
    %v1242 = vmul.f32 %v1201, %v1218
    %v1243 = vmul.f32 %v1202, %v1218
    %v1244 = vmul.f32 %v1203, %v1218
    %v1245 = vmul.f32 %v1204, %v1218
    %v1246 = vmul.f32 %v1205, %v1218
    %v1247 = vmul.f32 %v1206, %v1218
    %v1248 = vmul.f32 %v1207, %v1218
    %v1249 = vmul.f32 %v1208, %v1218
    %v1250 = vmul.f32 %v1209, %v1218
    %v1251 = vmul.f32 %v1210, %v1218
    %v1252 = vmul.f32 %v1211, %v1218
    %v1253 = vmul.f32 %v1212, %v1218
    %v1254 = vld [vmem:[%s3] sm:$0x1]
    %v1256 = vlaneseq
    %v1257 = vshrl.u32 %v1256, 7
    %v1258 = vsub.s32 0, %v1257
    %v1259 = vrot.slane %v1254, %v1258
    %v1261 = vadd.f32 %v1220, %v1259
    %v1262 = vadd.f32 %v1221, %v1259
    %v1263 = vadd.f32 %v1222, %v1259
    %v1264 = vadd.f32 %v1223, %v1259
    %v1265 = vadd.f32 %v1224, %v1259
    %v1266 = vadd.f32 %v1225, %v1259
    %v1267 = vadd.f32 %v1226, %v1259
    %v1268 = vadd.f32 %v1227, %v1259
    %v1269 = vadd.f32 %v1228, %v1259
    %v1270 = vadd.f32 %v1229, %v1259
    %v1271 = vadd.f32 %v1230, %v1259
    %v1272 = vadd.f32 %v1231, %v1259
    %v1273 = vadd.f32 %v1232, %v1259
    %v1274 = vadd.f32 %v1233, %v1259
    %v1275 = vadd.f32 %v1234, %v1259
    %v1276 = vadd.f32 %v1235, %v1259
    %v1277 = vadd.f32 %v1236, %v1259
    %v1278 = vadd.f32 %v1237, %v1259
    %v1279 = vadd.f32 %v1238, %v1259
    %v1280 = vadd.f32 %v1239, %v1259
    %v1281 = vadd.f32 %v1240, %v1259
    %v1282 = vadd.f32 %v1241, %v1259
    %v1283 = vadd.f32 %v1242, %v1259
    %v1284 = vadd.f32 %v1243, %v1259
    %v1285 = vadd.f32 %v1244, %v1259
    %v1286 = vadd.f32 %v1245, %v1259
    %v1287 = vadd.f32 %v1246, %v1259
    %v1288 = vadd.f32 %v1247, %v1259
    %v1289 = vadd.f32 %v1248, %v1259
    %v1290 = vadd.f32 %v1249, %v1259
    %v1291 = vadd.f32 %v1250, %v1259
    %v1292 = vadd.f32 %v1251, %v1259
    %v1293 = vadd.f32 %v1252, %v1259
    %v1294 = vadd.f32 %v1253, %v1259
    %v1295 = vmax.f32 %v1261, 0.0
    %v1296 = vmax.f32 %v1262, 0.0
    %v1297 = vmax.f32 %v1263, 0.0
    %v1298 = vmax.f32 %v1264, 0.0
    %v1299 = vmax.f32 %v1265, 0.0
    %v1300 = vmax.f32 %v1266, 0.0
    %v1301 = vmax.f32 %v1267, 0.0
    %v1302 = vmax.f32 %v1268, 0.0
    %v1303 = vmax.f32 %v1269, 0.0
    %v1304 = vmax.f32 %v1270, 0.0
    %v1305 = vmax.f32 %v1271, 0.0
    %v1306 = vmax.f32 %v1272, 0.0
    %v1307 = vmax.f32 %v1273, 0.0
    %v1308 = vmax.f32 %v1274, 0.0
    %v1309 = vmax.f32 %v1275, 0.0
    %v1310 = vmax.f32 %v1276, 0.0
    %v1311 = vmax.f32 %v1277, 0.0
    %v1312 = vmax.f32 %v1278, 0.0
    %v1313 = vmax.f32 %v1279, 0.0
    %v1314 = vmax.f32 %v1280, 0.0
    %v1315 = vmax.f32 %v1281, 0.0
    %v1316 = vmax.f32 %v1282, 0.0
    %v1317 = vmax.f32 %v1283, 0.0
    %v1318 = vmax.f32 %v1284, 0.0
    %v1319 = vmax.f32 %v1285, 0.0
    %v1320 = vmax.f32 %v1286, 0.0
    %v1321 = vmax.f32 %v1287, 0.0
    %v1322 = vmax.f32 %v1288, 0.0
    %v1323 = vmax.f32 %v1289, 0.0
    %v1324 = vmax.f32 %v1290, 0.0
    %v1325 = vmax.f32 %v1291, 0.0
    %v1326 = vmax.f32 %v1292, 0.0
    %v1327 = vmax.f32 %v1293, 0.0
    %v1328 = vmax.f32 %v1294, 0.0
    %1329 = vst.msk [vmem:[#allocation2] sm:$0xff] %vm124, %v1295
    %1330 = vst.msk [vmem:[#allocation2 + $0x8] sm:$0xff] %vm124, %v1296
    %1331 = vst.msk [vmem:[#allocation2 + $0x10] sm:$0xff] %vm124, %v1297
    %1332 = vst.msk [vmem:[#allocation2 + $0x18] sm:$0xff] %vm124, %v1298
    %1333 = vst.msk [vmem:[#allocation2 + $0x20] sm:$0xff] %vm124, %v1299
    %1334 = vst.msk [vmem:[#allocation2 + $0x28] sm:$0xff] %vm124, %v1300
    %1335 = vst.msk [vmem:[#allocation2 + $0x30] sm:$0xff] %vm124, %v1301
    %1336 = vst.msk [vmem:[#allocation2 + $0x38] sm:$0xff] %vm124, %v1302
    %1337 = vst.msk [vmem:[#allocation2 + $0x40] sm:$0xff] %vm124, %v1303
    %1338 = vst.msk [vmem:[#allocation2 + $0x48] sm:$0xff] %vm124, %v1304
    %1339 = vst.msk [vmem:[#allocation2 + $0x50] sm:$0xff] %vm124, %v1305
    %1340 = vst.msk [vmem:[#allocation2 + $0x58] sm:$0xff] %vm124, %v1306
    %1341 = vst.msk [vmem:[#allocation2 + $0x60] sm:$0xff] %vm124, %v1307
    %1342 = vst.msk [vmem:[#allocation2 + $0x68] sm:$0xff] %vm124, %v1308
    %1343 = vst.msk [vmem:[#allocation2 + $0x70] sm:$0xff] %vm124, %v1309
    %1344 = vst.msk [vmem:[#allocation2 + $0x78] sm:$0xff] %vm124, %v1310
    %1345 = vst.msk [vmem:[#allocation2 + $0x80] sm:$0xff] %vm124, %v1311
    %1346 = vst.msk [vmem:[#allocation2 + $0x88] sm:$0xff] %vm124, %v1312
    %1347 = vst.msk [vmem:[#allocation2 + $0x90] sm:$0xff] %vm124, %v1313
    %1348 = vst.msk [vmem:[#allocation2 + $0x98] sm:$0xff] %vm124, %v1314
    %1349 = vst.msk [vmem:[#allocation2 + $0xa0] sm:$0xff] %vm124, %v1315
    %1350 = vst.msk [vmem:[#allocation2 + $0xa8] sm:$0xff] %vm124, %v1316
    %1351 = vst.msk [vmem:[#allocation2 + $0xb0] sm:$0xff] %vm124, %v1317
    %1352 = vst.msk [vmem:[#allocation2 + $0xb8] sm:$0xff] %vm124, %v1318
    %1353 = vst.msk [vmem:[#allocation2 + $0xc0] sm:$0xff] %vm124, %v1319
    %1354 = vst.msk [vmem:[#allocation2 + $0xc8] sm:$0xff] %vm124, %v1320
    %1355 = vst.msk [vmem:[#allocation2 + $0xd0] sm:$0xff] %vm124, %v1321
    %1356 = vst.msk [vmem:[#allocation2 + $0xd8] sm:$0xff] %vm124, %v1322
    %1357 = vst.msk [vmem:[#allocation2 + $0xe0] sm:$0xff] %vm124, %v1323
    %1358 = vst.msk [vmem:[#allocation2 + $0xe8] sm:$0xff] %vm124, %v1324
    %1359 = vst.msk [vmem:[#allocation2 + $0xf0] sm:$0xff] %vm124, %v1325
    %1360 = vst.msk [vmem:[#allocation2 + $0xf8] sm:$0xff] %vm124, %v1326
    %1361 = vst.msk [vmem:[#allocation2 + $0x100] sm:$0xff] %vm124, %v1327
    %vm1362 = vcmask 521216
    %1363 = vst.msk [vmem:[#allocation2 + $0x108] sm:$0x3f] %vm1362, %v1328
    %vm1364 = vcmask 517120
    %1365 = vst.msk [vmem:[#allocation2 + $0x10e] sm:$0x3] %vm1364, 0.0
    %v1366 = vld [vmem:[#allocation2] ss:$2 sm:$0xff]
    %s1367 = scalar_lea.vmem [#allocation2], 16
    %v1368 = vld [vmem:[%s1367] ss:$2 sm:$0xff]
    %s1369 = scalar_lea.vmem [#allocation2], 32
    %v1370 = vld [vmem:[%s1369] ss:$2 sm:$0xff]
    %s1371 = scalar_lea.vmem [#allocation2], 48
    %v1372 = vld [vmem:[%s1371] ss:$2 sm:$0xff]
    %s1373 = scalar_lea.vmem [#allocation2], 64
    %v1374 = vld [vmem:[%s1373] ss:$2 sm:$0xff]
    %s1375 = scalar_lea.vmem [#allocation2], 80
    %v1376 = vld [vmem:[%s1375] ss:$2 sm:$0xff]
    %s1377 = scalar_lea.vmem [#allocation2], 96
    %v1378 = vld [vmem:[%s1377] ss:$2 sm:$0xff]
    %s1379 = scalar_lea.vmem [#allocation2], 112
    %v1380 = vld [vmem:[%s1379] ss:$2 sm:$0xff]
    %s1381 = scalar_lea.vmem [#allocation2], 128
    %v1382 = vld [vmem:[%s1381] ss:$2 sm:$0xff]
    %s1383 = scalar_lea.vmem [#allocation2], 144
    %v1384 = vld [vmem:[%s1383] ss:$2 sm:$0xff]
    %s1385 = scalar_lea.vmem [#allocation2], 160
    %v1386 = vld [vmem:[%s1385] ss:$2 sm:$0xff]
    %s1387 = scalar_lea.vmem [#allocation2], 176
    %v1388 = vld [vmem:[%s1387] ss:$2 sm:$0xff]
    %s1389 = scalar_lea.vmem [#allocation2], 192
    %v1390 = vld [vmem:[%s1389] ss:$2 sm:$0xff]
    %s1391 = scalar_lea.vmem [#allocation2], 208
    %v1392 = vld [vmem:[%s1391] ss:$2 sm:$0xff]
    %s1393 = scalar_lea.vmem [#allocation2], 224
    %v1394 = vld [vmem:[%s1393] ss:$2 sm:$0xff]
    %s1395 = scalar_lea.vmem [#allocation2], 240
    %v1396 = vld [vmem:[%s1395] ss:$2 sm:$0xff]
    %s1397 = scalar_lea.vmem [#allocation2], 256
    %v1398 = vld [vmem:[%s1397] ss:$2 sm:$0xff]
    %s1399 = scalar_lea.vmem [#allocation2], 1
    %v1400 = vld [vmem:[%s1399] ss:$2 sm:$0xff]
    %s1401 = scalar_lea.vmem [#allocation2], 17
    %v1402 = vld [vmem:[%s1401] ss:$2 sm:$0xff]
    %s1403 = scalar_lea.vmem [#allocation2], 33
    %v1404 = vld [vmem:[%s1403] ss:$2 sm:$0xff]
    %s1405 = scalar_lea.vmem [#allocation2], 49
    %v1406 = vld [vmem:[%s1405] ss:$2 sm:$0xff]
    %s1407 = scalar_lea.vmem [#allocation2], 65
    %v1408 = vld [vmem:[%s1407] ss:$2 sm:$0xff]
    %s1409 = scalar_lea.vmem [#allocation2], 81
    %v1410 = vld [vmem:[%s1409] ss:$2 sm:$0xff]
    %s1411 = scalar_lea.vmem [#allocation2], 97
    %v1412 = vld [vmem:[%s1411] ss:$2 sm:$0xff]
    %s1413 = scalar_lea.vmem [#allocation2], 113
    %v1414 = vld [vmem:[%s1413] ss:$2 sm:$0xff]
    %s1415 = scalar_lea.vmem [#allocation2], 129
    %v1416 = vld [vmem:[%s1415] ss:$2 sm:$0xff]
    %s1417 = scalar_lea.vmem [#allocation2], 145
    %v1418 = vld [vmem:[%s1417] ss:$2 sm:$0xff]
    %s1419 = scalar_lea.vmem [#allocation2], 161
    %v1420 = vld [vmem:[%s1419] ss:$2 sm:$0xff]
    %s1421 = scalar_lea.vmem [#allocation2], 177
    %v1422 = vld [vmem:[%s1421] ss:$2 sm:$0xff]
    %s1423 = scalar_lea.vmem [#allocation2], 193
    %v1424 = vld [vmem:[%s1423] ss:$2 sm:$0xff]
    %s1425 = scalar_lea.vmem [#allocation2], 209
    %v1426 = vld [vmem:[%s1425] ss:$2 sm:$0xff]
    %s1427 = scalar_lea.vmem [#allocation2], 225
    %v1428 = vld [vmem:[%s1427] ss:$2 sm:$0xff]
    %s1429 = scalar_lea.vmem [#allocation2], 241
    %v1430 = vld [vmem:[%s1429] ss:$2 sm:$0xff]
    %s1431 = scalar_lea.vmem [#allocation2], 257
    %v1432 = vld [vmem:[%s1431] ss:$2 sm:$0xff]
    %v1433 = vmax.f32 %v1366, %v1400
    %v1434 = vmax.f32 %v1368, %v1402
    %v1435 = vmax.f32 %v1370, %v1404
    %v1436 = vmax.f32 %v1372, %v1406
    %v1437 = vmax.f32 %v1374, %v1408
    %v1438 = vmax.f32 %v1376, %v1410
    %v1439 = vmax.f32 %v1378, %v1412
    %v1440 = vmax.f32 %v1380, %v1414
    %v1441 = vmax.f32 %v1382, %v1416
    %v1442 = vmax.f32 %v1384, %v1418
    %v1443 = vmax.f32 %v1386, %v1420
    %v1444 = vmax.f32 %v1388, %v1422
    %v1445 = vmax.f32 %v1390, %v1424
    %v1446 = vmax.f32 %v1392, %v1426
    %v1447 = vmax.f32 %v1394, %v1428
    %v1448 = vmax.f32 %v1396, %v1430
    %v1449 = vmax.f32 %v1398, %v1432
    %v1450 = vld [vmem:[%s7] sm:$0xff]
    %v1451 = vld [vmem:[%s7 + $0x8] sm:$0xff]
    %v1452 = vld [vmem:[%s7 + $0x10] sm:$0xff]
    %v1453 = vld [vmem:[%s7 + $0x18] sm:$0xff]
    %v1454 = vld [vmem:[%s7 + $0x20] sm:$0xff]
    %v1455 = vld [vmem:[%s7 + $0x28] sm:$0xff]
    %v1456 = vld [vmem:[%s7 + $0x30] sm:$0xff]
    %v1457 = vld [vmem:[%s7 + $0x38] sm:$0xff]
    %v1458 = vld [vmem:[%s7 + $0x40] sm:$0xff]
    %v1459 = vld [vmem:[%s7 + $0x48] sm:$0xff]
    %v1460 = vld [vmem:[%s7 + $0x50] sm:$0xff]
    %v1461 = vld [vmem:[%s7 + $0x58] sm:$0xff]
    %v1462 = vld [vmem:[%s7 + $0x60] sm:$0xff]
    %v1463 = vld [vmem:[%s7 + $0x68] sm:$0xff]
    %v1464 = vld [vmem:[%s7 + $0x70] sm:$0xff]
    %v1465 = vld [vmem:[%s7 + $0x78] sm:$0xff]
    %v1466 = vld [vmem:[%s7 + $0x80] sm:$0xff]
    %1468 = vset.pattern.permute.xlu0 0
    %1469 = vperm.xlu0 %1468, %v1450
    %v1470 = vpop.permute.xlu0 %1469
    %1473 = vset.pattern.permute.xlu0 0
    %1474 = vperm.xlu0 %1473, %v1451
    %v1475 = vpop.permute.xlu0 %1474
    %1478 = vset.pattern.permute.xlu0 0
    %1479 = vperm.xlu0 %1478, %v1452
    %v1480 = vpop.permute.xlu0 %1479
    %1483 = vset.pattern.permute.xlu0 0
    %1484 = vperm.xlu0 %1483, %v1453
    %v1485 = vpop.permute.xlu0 %1484
    %1488 = vset.pattern.permute.xlu0 0
    %1489 = vperm.xlu0 %1488, %v1454
    %v1490 = vpop.permute.xlu0 %1489
    %1493 = vset.pattern.permute.xlu0 0
    %1494 = vperm.xlu0 %1493, %v1455
    %v1495 = vpop.permute.xlu0 %1494
    %1498 = vset.pattern.permute.xlu0 0
    %1499 = vperm.xlu0 %1498, %v1456
    %v1500 = vpop.permute.xlu0 %1499
    %1503 = vset.pattern.permute.xlu0 0
    %1504 = vperm.xlu0 %1503, %v1457
    %v1505 = vpop.permute.xlu0 %1504
    %1508 = vset.pattern.permute.xlu0 0
    %1509 = vperm.xlu0 %1508, %v1458
    %v1510 = vpop.permute.xlu0 %1509
    %1513 = vset.pattern.permute.xlu0 0
    %1514 = vperm.xlu0 %1513, %v1459
    %v1515 = vpop.permute.xlu0 %1514
    %1518 = vset.pattern.permute.xlu0 0
    %1519 = vperm.xlu0 %1518, %v1460
    %v1520 = vpop.permute.xlu0 %1519
    %1523 = vset.pattern.permute.xlu0 0
    %1524 = vperm.xlu0 %1523, %v1461
    %v1525 = vpop.permute.xlu0 %1524
    %1528 = vset.pattern.permute.xlu0 0
    %1529 = vperm.xlu0 %1528, %v1462
    %v1530 = vpop.permute.xlu0 %1529
    %1533 = vset.pattern.permute.xlu0 0
    %1534 = vperm.xlu0 %1533, %v1463
    %v1535 = vpop.permute.xlu0 %1534
    %1538 = vset.pattern.permute.xlu0 0
    %1539 = vperm.xlu0 %1538, %v1464
    %v1540 = vpop.permute.xlu0 %1539
    %1543 = vset.pattern.permute.xlu0 0
    %1544 = vperm.xlu0 %1543, %v1465
    %v1545 = vpop.permute.xlu0 %1544
    %1548 = vset.pattern.permute.xlu0 0
    %1549 = vperm.xlu0 %1548, %v1466
    %v1550 = vpop.permute.xlu0 %1549
    %v1552 = vmul.f32 %v1433, %v1470
    %v1553 = vmul.f32 %v1434, %v1475
    %v1554 = vmul.f32 %v1435, %v1480
    %v1555 = vmul.f32 %v1436, %v1485
    %v1556 = vmul.f32 %v1437, %v1490
    %v1557 = vmul.f32 %v1438, %v1495
    %v1558 = vmul.f32 %v1439, %v1500
    %v1559 = vmul.f32 %v1440, %v1505
    %v1560 = vmul.f32 %v1441, %v1510
    %v1561 = vmul.f32 %v1442, %v1515
    %v1562 = vmul.f32 %v1443, %v1520
    %v1563 = vmul.f32 %v1444, %v1525
    %v1564 = vmul.f32 %v1445, %v1530
    %v1565 = vmul.f32 %v1446, %v1535
    %v1566 = vmul.f32 %v1447, %v1540
    %v1567 = vmul.f32 %v1448, %v1545
    %v1568 = vmul.f32 %v1449, %v1550
    %p1569 = scmp.eq.s32.totalorder 0, 0
    // Predicated region
    $region46: #{tpu_custom_call.1} parent=1 // pred_check
      %p1570 = pneg %p1569
    $region47: #{tpu_custom_call.1} parent=1 // pred_check_branch
      %1572 = sbr.rel (%p1570) target = $region49
    $region48: #{tpu_custom_call.1} parent=1 // pred_region
      %1573 = vst.msk [vmem:[#allocation3] sm:$0xff] %vm124, 0.0
      %1574 = vst.msk [vmem:[#allocation3 + $0x90] sm:$0xff] %vm124, 0.0
    $region49: #{tpu_custom_call.1} parent=1 // pred_fallthru
      _
    %1575 = vst.msk [vmem:[#allocation3 + $0x8] sm:$0xff] %vm124, %v1552
    %1576 = vst.msk [vmem:[#allocation3 + $0x10] sm:$0xff] %vm124, %v1553
    %1577 = vst.msk [vmem:[#allocation3 + $0x18] sm:$0xff] %vm124, %v1554
    %1578 = vst.msk [vmem:[#allocation3 + $0x20] sm:$0xff] %vm124, %v1555
    %1579 = vst.msk [vmem:[#allocation3 + $0x28] sm:$0xff] %vm124, %v1556
    %1580 = vst.msk [vmem:[#allocation3 + $0x30] sm:$0xff] %vm124, %v1557
    %1581 = vst.msk [vmem:[#allocation3 + $0x38] sm:$0xff] %vm124, %v1558
    %1582 = vst.msk [vmem:[#allocation3 + $0x40] sm:$0xff] %vm124, %v1559
    %1583 = vst.msk [vmem:[#allocation3 + $0x48] sm:$0xff] %vm124, %v1560
    %1584 = vst.msk [vmem:[#allocation3 + $0x50] sm:$0xff] %vm124, %v1561
    %1585 = vst.msk [vmem:[#allocation3 + $0x58] sm:$0xff] %vm124, %v1562
    %1586 = vst.msk [vmem:[#allocation3 + $0x60] sm:$0xff] %vm124, %v1563
    %1587 = vst.msk [vmem:[#allocation3 + $0x68] sm:$0xff] %vm124, %v1564
    %1588 = vst.msk [vmem:[#allocation3 + $0x70] sm:$0xff] %vm124, %v1565
    %1589 = vst.msk [vmem:[#allocation3 + $0x78] sm:$0xff] %vm124, %v1566
    %1590 = vst.msk [vmem:[#allocation3 + $0x80] sm:$0xff] %vm124, %v1567
    %1591 = vst.msk [vmem:[#allocation3 + $0x88] sm:$0xff] %vm124, %v1568
    %v1592 = vld [vmem:[#allocation3 + $0x7] sm:$0xff]
    %v1593 = vld [vmem:[#allocation3 + $0xf] sm:$0xff]
    %v1594 = vld [vmem:[#allocation3 + $0x17] sm:$0xff]
    %v1595 = vld [vmem:[#allocation3 + $0x1f] sm:$0xff]
    %v1596 = vld [vmem:[#allocation3 + $0x27] sm:$0xff]
    %v1597 = vld [vmem:[#allocation3 + $0x2f] sm:$0xff]
    %v1598 = vld [vmem:[#allocation3 + $0x37] sm:$0xff]
    %v1599 = vld [vmem:[#allocation3 + $0x3f] sm:$0xff]
    %v1600 = vld [vmem:[#allocation3 + $0x47] sm:$0xff]
    %v1601 = vld [vmem:[#allocation3 + $0x4f] sm:$0xff]
    %v1602 = vld [vmem:[#allocation3 + $0x57] sm:$0xff]
    %v1603 = vld [vmem:[#allocation3 + $0x5f] sm:$0xff]
    %v1604 = vld [vmem:[#allocation3 + $0x67] sm:$0xff]
    %v1605 = vld [vmem:[#allocation3 + $0x6f] sm:$0xff]
    %v1606 = vld [vmem:[#allocation3 + $0x77] sm:$0xff]
    %v1607 = vld [vmem:[#allocation3 + $0x7f] sm:$0xff]
    %v1608 = vld [vmem:[#allocation3 + $0x87] sm:$0xff]
    %v1609 = vld [vmem:[#allocation3 + $0x9] sm:$0xff]
    %v1610 = vld [vmem:[#allocation3 + $0x11] sm:$0xff]
    %v1611 = vld [vmem:[#allocation3 + $0x19] sm:$0xff]
    %v1612 = vld [vmem:[#allocation3 + $0x21] sm:$0xff]
    %v1613 = vld [vmem:[#allocation3 + $0x29] sm:$0xff]
    %v1614 = vld [vmem:[#allocation3 + $0x31] sm:$0xff]
    %v1615 = vld [vmem:[#allocation3 + $0x39] sm:$0xff]
    %v1616 = vld [vmem:[#allocation3 + $0x41] sm:$0xff]
    %v1617 = vld [vmem:[#allocation3 + $0x49] sm:$0xff]
    %v1618 = vld [vmem:[#allocation3 + $0x51] sm:$0xff]
    %v1619 = vld [vmem:[#allocation3 + $0x59] sm:$0xff]
    %v1620 = vld [vmem:[#allocation3 + $0x61] sm:$0xff]
    %v1621 = vld [vmem:[#allocation3 + $0x69] sm:$0xff]
    %v1622 = vld [vmem:[#allocation3 + $0x71] sm:$0xff]
    %v1623 = vld [vmem:[#allocation3 + $0x79] sm:$0xff]
    %v1624 = vld [vmem:[#allocation3 + $0x81] sm:$0xff]
    %v1625 = vld [vmem:[#allocation3 + $0x89] sm:$0xff]
    %v1626 = vld [vmem:[%s4] sm:$0xff]
    %v1627 = vld [vmem:[%s4 + $0x8] sm:$0xff]
    %v1628 = vld [vmem:[%s4 + $0x10] sm:$0xff]
    %v1629 = vld [vmem:[%s4 + $0x18] sm:$0xff]
    %v1630 = vld [vmem:[%s4 + $0x20] sm:$0xff]
    %v1631 = vld [vmem:[%s4 + $0x28] sm:$0xff]
    %v1632 = vld [vmem:[%s4 + $0x30] sm:$0xff]
    %v1633 = vld [vmem:[%s4 + $0x38] sm:$0xff]
    %s1634 = scalar_lea.vmem %s4, 64
    %v1635 = vld [vmem:[%s1634] sm:$0xff]
    %v1636 = vld [vmem:[%s1634 + $0x8] sm:$0xff]
    %v1637 = vld [vmem:[%s1634 + $0x10] sm:$0xff]
    %v1638 = vld [vmem:[%s1634 + $0x18] sm:$0xff]
    %v1639 = vld [vmem:[%s1634 + $0x20] sm:$0xff]
    %v1640 = vld [vmem:[%s1634 + $0x28] sm:$0xff]
    %v1641 = vld [vmem:[%s1634 + $0x30] sm:$0xff]
    %v1642 = vld [vmem:[%s1634 + $0x38] sm:$0xff]
    %v1644 = vsel %vm124, %v1552, 0
    %v1647 = vsel %vm124, %v1553, 0
    %v1650 = vsel %vm124, %v1554, 0
    %v1653 = vsel %vm124, %v1555, 0
    %v1656 = vsel %vm124, %v1556, 0
    %v1659 = vsel %vm124, %v1557, 0
    %v1662 = vsel %vm124, %v1558, 0
    %v1665 = vsel %vm124, %v1559, 0
    %v1668 = vsel %vm124, %v1560, 0
    %v1671 = vsel %vm124, %v1561, 0
    %v1674 = vsel %vm124, %v1562, 0
    %v1677 = vsel %vm124, %v1563, 0
    %v1680 = vsel %vm124, %v1564, 0
    %v1683 = vsel %vm124, %v1565, 0
    %v1686 = vsel %vm124, %v1566, 0
    %v1689 = vsel %vm124, %v1567, 0
    %v1692 = vsel %vm124, %v1568, 0
    %1694 = vmatprep.subr.mxu0 0.0
    %1695 = vmatpush1.msra.mxu0 0.0
    %1696 = vmatprep.subr.mxu0 0.0
    %1697 = vmatpush1.msra.mxu0 0.0
    %1698 = vmatprep.subr.mxu0 0.0
    %1699 = vmatpush1.msra.mxu0 0.0
    %1700 = vmatprep.subr.mxu0 0.0
    %1701 = vmatpush1.msra.mxu0 0.0
    %1702 = vmatprep.subr.mxu0 0.0
    %1703 = vmatpush1.msra.mxu0 0.0
    %1704 = vmatprep.subr.mxu0 0.0
    %1705 = vmatpush1.msra.mxu0 0.0
    %1706 = vmatprep.subr.mxu0 0.0
    %1707 = vmatpush1.msra.mxu0 0.0
    %1708 = vmatprep.subr.mxu0 0.0
    %1709 = vmatpush1.msra.mxu0 0.0
    %1710 = vmatprep.subr.mxu0 0.0
    %1711 = vmatpush1.msra.mxu0 %v1642
    %1712 = vmatprep.subr.mxu0 0.0
    %1713 = vmatpush1.msra.mxu0 %v1641
    %1714 = vmatprep.subr.mxu0 0.0
    %1715 = vmatpush1.msra.mxu0 %v1640
    %1716 = vmatprep.subr.mxu0 0.0
    %1717 = vmatpush1.msra.mxu0 %v1639
    %1718 = vmatprep.subr.mxu0 0.0
    %1719 = vmatpush1.msra.mxu0 %v1638
    %1720 = vmatprep.subr.mxu0 0.0
    %1721 = vmatpush1.msra.mxu0 %v1637
    %1722 = vmatprep.subr.mxu0 0.0
    %1723 = vmatpush1.msra.mxu0 %v1636
    %1724 = vmatprep.subr.mxu0 0.0
    %1725 = vmatpush1.msra.mxu0 %v1635
    %1726 = vmatprep.subr.mxu0 0.0
    %1727 = vmatpush2.msra.mxu0 0.0
    %1728 = vmatprep.subr.mxu0 0.0
    %1729 = vmatpush2.msra.mxu0 0.0
    %1730 = vmatprep.subr.mxu0 0.0
    %1731 = vmatpush2.msra.mxu0 0.0
    %1732 = vmatprep.subr.mxu0 0.0
    %1733 = vmatpush2.msra.mxu0 0.0
    %1734 = vmatprep.subr.mxu0 0.0
    %1735 = vmatpush2.msra.mxu0 0.0
    %1736 = vmatprep.subr.mxu0 0.0
    %1737 = vmatpush2.msra.mxu0 0.0
    %1738 = vmatprep.subr.mxu0 0.0
    %1739 = vmatpush2.msra.mxu0 0.0
    %1740 = vmatprep.subr.mxu0 0.0
    %1741 = vmatpush2.msra.mxu0 0.0
    %1742 = vmatprep.subr.mxu0 0.0
    %1743 = vmatpush2.msra.mxu0 0.0
    %1744 = vmatprep.subr.mxu0 0.0
    %1745 = vmatpush2.msra.mxu0 0.0
    %1746 = vmatprep.subr.mxu0 0.0
    %1747 = vmatpush2.msra.mxu0 0.0
    %1748 = vmatprep.subr.mxu0 0.0
    %1749 = vmatpush2.msra.mxu0 0.0
    %1750 = vmatprep.subr.mxu0 0.0
    %1751 = vmatpush2.msra.mxu0 0.0
    %1752 = vmatprep.subr.mxu0 0.0
    %1753 = vmatpush2.msra.mxu0 0.0
    %1754 = vmatprep.subr.mxu0 0.0
    %1755 = vmatpush2.msra.mxu0 0.0
    %1756 = vmatprep.subr.mxu0 0.0
    %1757 = vmatpush2.msra.mxu0 0.0
    %1758 = vmatprep.mubr.f32.mxu0 0.0
    %1759 = vmatmul.mubr.f32.gmra.mxu0 %v1644
    %v1760 = vpop.f32.mrf.mxu0
    %v1761 = vadd.f32 0.0, %v1760
    %v1762 = vpop.f32.mrf.mxu0
    %1763 = vmatprep.mubr.f32.mxu0 0.0
    %1764 = vmatmul.mubr.f32.gmra.mxu0 %v1647
    %v1765 = vpop.f32.mrf.mxu0
    %v1766 = vadd.f32 0.0, %v1765
    %v1767 = vpop.f32.mrf.mxu0
    %1768 = vmatprep.mubr.f32.mxu0 0.0
    %1769 = vmatmul.mubr.f32.gmra.mxu0 %v1650
    %v1770 = vpop.f32.mrf.mxu0
    %v1771 = vadd.f32 0.0, %v1770
    %v1772 = vpop.f32.mrf.mxu0
    %1773 = vmatprep.mubr.f32.mxu0 0.0
    %1774 = vmatmul.mubr.f32.gmra.mxu0 %v1653
    %v1775 = vpop.f32.mrf.mxu0
    %v1776 = vadd.f32 0.0, %v1775
    %v1777 = vpop.f32.mrf.mxu0
    %1778 = vmatprep.mubr.f32.mxu0 0.0
    %1779 = vmatmul.mubr.f32.gmra.mxu0 %v1656
    %v1780 = vpop.f32.mrf.mxu0
    %v1781 = vadd.f32 0.0, %v1780
    %v1782 = vpop.f32.mrf.mxu0
    %1783 = vmatprep.mubr.f32.mxu0 0.0
    %1784 = vmatmul.mubr.f32.gmra.mxu0 %v1659
    %v1785 = vpop.f32.mrf.mxu0
    %v1786 = vadd.f32 0.0, %v1785
    %v1787 = vpop.f32.mrf.mxu0
    %1788 = vmatprep.mubr.f32.mxu0 0.0
    %1789 = vmatmul.mubr.f32.gmra.mxu0 %v1662
    %v1790 = vpop.f32.mrf.mxu0
    %v1791 = vadd.f32 0.0, %v1790
    %v1792 = vpop.f32.mrf.mxu0
    %1793 = vmatprep.mubr.f32.mxu0 0.0
    %1794 = vmatmul.mubr.f32.gmra.mxu0 %v1665
    %v1795 = vpop.f32.mrf.mxu0
    %v1796 = vadd.f32 0.0, %v1795
    %v1797 = vpop.f32.mrf.mxu0
    %1798 = vmatprep.mubr.f32.mxu0 0.0
    %1799 = vmatmul.mubr.f32.gmra.mxu0 %v1668
    %v1800 = vpop.f32.mrf.mxu0
    %v1801 = vadd.f32 0.0, %v1800
    %v1802 = vpop.f32.mrf.mxu0
    %1803 = vmatprep.mubr.f32.mxu0 0.0
    %1804 = vmatmul.mubr.f32.gmra.mxu0 %v1671
    %v1805 = vpop.f32.mrf.mxu0
    %v1806 = vadd.f32 0.0, %v1805
    %v1807 = vpop.f32.mrf.mxu0
    %1808 = vmatprep.mubr.f32.mxu0 0.0
    %1809 = vmatmul.mubr.f32.gmra.mxu0 %v1674
    %v1810 = vpop.f32.mrf.mxu0
    %v1811 = vadd.f32 0.0, %v1810
    %v1812 = vpop.f32.mrf.mxu0
    %1813 = vmatprep.mubr.f32.mxu0 0.0
    %1814 = vmatmul.mubr.f32.gmra.mxu0 %v1677
    %v1815 = vpop.f32.mrf.mxu0
    %v1816 = vadd.f32 0.0, %v1815
    %v1817 = vpop.f32.mrf.mxu0
    %1818 = vmatprep.mubr.f32.mxu0 0.0
    %1819 = vmatmul.mubr.f32.gmra.mxu0 %v1680
    %v1820 = vpop.f32.mrf.mxu0
    %v1821 = vadd.f32 0.0, %v1820
    %v1822 = vpop.f32.mrf.mxu0
    %1823 = vmatprep.mubr.f32.mxu0 0.0
    %1824 = vmatmul.mubr.f32.gmra.mxu0 %v1683
    %v1825 = vpop.f32.mrf.mxu0
    %v1826 = vadd.f32 0.0, %v1825
    %v1827 = vpop.f32.mrf.mxu0
    %1828 = vmatprep.mubr.f32.mxu0 0.0
    %1829 = vmatmul.mubr.f32.gmra.mxu0 %v1686
    %v1830 = vpop.f32.mrf.mxu0
    %v1831 = vadd.f32 0.0, %v1830
    %v1832 = vpop.f32.mrf.mxu0
    %1833 = vmatprep.mubr.f32.mxu0 0.0
    %1834 = vmatmul.mubr.f32.gmra.mxu0 %v1689
    %v1835 = vpop.f32.mrf.mxu0
    %v1836 = vadd.f32 0.0, %v1835
    %v1837 = vpop.f32.mrf.mxu0
    %1838 = vmatprep.mubr.f32.mxu0 0.0
    %1839 = vmatmul.mubr.f32.gmra.mxu0 %v1692
    %v1840 = vpop.f32.mrf.mxu0
    %v1841 = vadd.f32 0.0, %v1840
    %v1842 = vpop.f32.mrf.mxu0
    %1843 = vdwg.mxu0
    %v1845 = vsel %vm124, %v1592, 0
    %v1848 = vsel %vm124, %v1593, 0
    %v1851 = vsel %vm124, %v1594, 0
    %v1854 = vsel %vm124, %v1595, 0
    %v1857 = vsel %vm124, %v1596, 0
    %v1860 = vsel %vm124, %v1597, 0
    %v1863 = vsel %vm124, %v1598, 0
    %v1866 = vsel %vm124, %v1599, 0
    %v1869 = vsel %vm124, %v1600, 0
    %v1872 = vsel %vm124, %v1601, 0
    %v1875 = vsel %vm124, %v1602, 0
    %v1878 = vsel %vm124, %v1603, 0
    %v1881 = vsel %vm124, %v1604, 0
    %v1884 = vsel %vm124, %v1605, 0
    %v1887 = vsel %vm124, %v1606, 0
    %v1890 = vsel %vm124, %v1607, 0
    %v1893 = vsel %vm124, %v1608, 0
    %1895 = vmatprep.subr.mxu0 0.0
    %1896 = vmatpush1.msra.mxu0 0.0
    %1897 = vmatprep.subr.mxu0 0.0
    %1898 = vmatpush1.msra.mxu0 0.0
    %1899 = vmatprep.subr.mxu0 0.0
    %1900 = vmatpush1.msra.mxu0 0.0
    %1901 = vmatprep.subr.mxu0 0.0
    %1902 = vmatpush1.msra.mxu0 0.0
    %1903 = vmatprep.subr.mxu0 0.0
    %1904 = vmatpush1.msra.mxu0 0.0
    %1905 = vmatprep.subr.mxu0 0.0
    %1906 = vmatpush1.msra.mxu0 0.0
    %1907 = vmatprep.subr.mxu0 0.0
    %1908 = vmatpush1.msra.mxu0 0.0
    %1909 = vmatprep.subr.mxu0 0.0
    %1910 = vmatpush1.msra.mxu0 0.0
    %1911 = vmatprep.subr.mxu0 0.0
    %1912 = vmatpush1.msra.mxu0 %v1633
    %1913 = vmatprep.subr.mxu0 0.0
    %1914 = vmatpush1.msra.mxu0 %v1632
    %1915 = vmatprep.subr.mxu0 0.0
    %1916 = vmatpush1.msra.mxu0 %v1631
    %1917 = vmatprep.subr.mxu0 0.0
    %1918 = vmatpush1.msra.mxu0 %v1630
    %1919 = vmatprep.subr.mxu0 0.0
    %1920 = vmatpush1.msra.mxu0 %v1629
    %1921 = vmatprep.subr.mxu0 0.0
    %1922 = vmatpush1.msra.mxu0 %v1628
    %1923 = vmatprep.subr.mxu0 0.0
    %1924 = vmatpush1.msra.mxu0 %v1627
    %1925 = vmatprep.subr.mxu0 0.0
    %1926 = vmatpush1.msra.mxu0 %v1626
    %1927 = vmatprep.subr.mxu0 0.0
    %1928 = vmatpush2.msra.mxu0 0.0
    %1929 = vmatprep.subr.mxu0 0.0
    %1930 = vmatpush2.msra.mxu0 0.0
    %1931 = vmatprep.subr.mxu0 0.0
    %1932 = vmatpush2.msra.mxu0 0.0
    %1933 = vmatprep.subr.mxu0 0.0
    %1934 = vmatpush2.msra.mxu0 0.0
    %1935 = vmatprep.subr.mxu0 0.0
    %1936 = vmatpush2.msra.mxu0 0.0
    %1937 = vmatprep.subr.mxu0 0.0
    %1938 = vmatpush2.msra.mxu0 0.0
    %1939 = vmatprep.subr.mxu0 0.0
    %1940 = vmatpush2.msra.mxu0 0.0
    %1941 = vmatprep.subr.mxu0 0.0
    %1942 = vmatpush2.msra.mxu0 0.0
    %1943 = vmatprep.subr.mxu0 0.0
    %1944 = vmatpush2.msra.mxu0 0.0
    %1945 = vmatprep.subr.mxu0 0.0
    %1946 = vmatpush2.msra.mxu0 0.0
    %1947 = vmatprep.subr.mxu0 0.0
    %1948 = vmatpush2.msra.mxu0 0.0
    %1949 = vmatprep.subr.mxu0 0.0
    %1950 = vmatpush2.msra.mxu0 0.0
    %1951 = vmatprep.subr.mxu0 0.0
    %1952 = vmatpush2.msra.mxu0 0.0
    %1953 = vmatprep.subr.mxu0 0.0
    %1954 = vmatpush2.msra.mxu0 0.0
    %1955 = vmatprep.subr.mxu0 0.0
    %1956 = vmatpush2.msra.mxu0 0.0
    %1957 = vmatprep.subr.mxu0 0.0
    %1958 = vmatpush2.msra.mxu0 0.0
    %1959 = vmatprep.mubr.f32.mxu0 0.0
    %1960 = vmatmul.mubr.f32.gmra.mxu0 %v1845
    %v1961 = vpop.f32.mrf.mxu0
    %v1962 = vadd.f32 %v1761, %v1961
    %v1963 = vpop.f32.mrf.mxu0
    %1964 = vmatprep.mubr.f32.mxu0 0.0
    %1965 = vmatmul.mubr.f32.gmra.mxu0 %v1848
    %v1966 = vpop.f32.mrf.mxu0
    %v1967 = vadd.f32 %v1766, %v1966
    %v1968 = vpop.f32.mrf.mxu0
    %1969 = vmatprep.mubr.f32.mxu0 0.0
    %1970 = vmatmul.mubr.f32.gmra.mxu0 %v1851
    %v1971 = vpop.f32.mrf.mxu0
    %v1972 = vadd.f32 %v1771, %v1971
    %v1973 = vpop.f32.mrf.mxu0
    %1974 = vmatprep.mubr.f32.mxu0 0.0
    %1975 = vmatmul.mubr.f32.gmra.mxu0 %v1854
    %v1976 = vpop.f32.mrf.mxu0
    %v1977 = vadd.f32 %v1776, %v1976
    %v1978 = vpop.f32.mrf.mxu0
    %1979 = vmatprep.mubr.f32.mxu0 0.0
    %1980 = vmatmul.mubr.f32.gmra.mxu0 %v1857
    %v1981 = vpop.f32.mrf.mxu0
    %v1982 = vadd.f32 %v1781, %v1981
    %v1983 = vpop.f32.mrf.mxu0
    %1984 = vmatprep.mubr.f32.mxu0 0.0
    %1985 = vmatmul.mubr.f32.gmra.mxu0 %v1860
    %v1986 = vpop.f32.mrf.mxu0
    %v1987 = vadd.f32 %v1786, %v1986
    %v1988 = vpop.f32.mrf.mxu0
    %1989 = vmatprep.mubr.f32.mxu0 0.0
    %1990 = vmatmul.mubr.f32.gmra.mxu0 %v1863
    %v1991 = vpop.f32.mrf.mxu0
    %v1992 = vadd.f32 %v1791, %v1991
    %v1993 = vpop.f32.mrf.mxu0
    %1994 = vmatprep.mubr.f32.mxu0 0.0
    %1995 = vmatmul.mubr.f32.gmra.mxu0 %v1866
    %v1996 = vpop.f32.mrf.mxu0
    %v1997 = vadd.f32 %v1796, %v1996
    %v1998 = vpop.f32.mrf.mxu0
    %1999 = vmatprep.mubr.f32.mxu0 0.0
    %2000 = vmatmul.mubr.f32.gmra.mxu0 %v1869
    %v2001 = vpop.f32.mrf.mxu0
    %v2002 = vadd.f32 %v1801, %v2001
    %v2003 = vpop.f32.mrf.mxu0
    %2004 = vmatprep.mubr.f32.mxu0 0.0
    %2005 = vmatmul.mubr.f32.gmra.mxu0 %v1872
    %v2006 = vpop.f32.mrf.mxu0
    %v2007 = vadd.f32 %v1806, %v2006
    %v2008 = vpop.f32.mrf.mxu0
    %2009 = vmatprep.mubr.f32.mxu0 0.0
    %2010 = vmatmul.mubr.f32.gmra.mxu0 %v1875
    %v2011 = vpop.f32.mrf.mxu0
    %v2012 = vadd.f32 %v1811, %v2011
    %v2013 = vpop.f32.mrf.mxu0
    %2014 = vmatprep.mubr.f32.mxu0 0.0
    %2015 = vmatmul.mubr.f32.gmra.mxu0 %v1878
    %v2016 = vpop.f32.mrf.mxu0
    %v2017 = vadd.f32 %v1816, %v2016
    %v2018 = vpop.f32.mrf.mxu0
    %2019 = vmatprep.mubr.f32.mxu0 0.0
    %2020 = vmatmul.mubr.f32.gmra.mxu0 %v1881
    %v2021 = vpop.f32.mrf.mxu0
    %v2022 = vadd.f32 %v1821, %v2021
    %v2023 = vpop.f32.mrf.mxu0
    %2024 = vmatprep.mubr.f32.mxu0 0.0
    %2025 = vmatmul.mubr.f32.gmra.mxu0 %v1884
    %v2026 = vpop.f32.mrf.mxu0
    %v2027 = vadd.f32 %v1826, %v2026
    %v2028 = vpop.f32.mrf.mxu0
    %2029 = vmatprep.mubr.f32.mxu0 0.0
    %2030 = vmatmul.mubr.f32.gmra.mxu0 %v1887
    %v2031 = vpop.f32.mrf.mxu0
    %v2032 = vadd.f32 %v1831, %v2031
    %v2033 = vpop.f32.mrf.mxu0
    %2034 = vmatprep.mubr.f32.mxu0 0.0
    %2035 = vmatmul.mubr.f32.gmra.mxu0 %v1890
    %v2036 = vpop.f32.mrf.mxu0
    %v2037 = vadd.f32 %v1836, %v2036
    %v2038 = vpop.f32.mrf.mxu0
    %2039 = vmatprep.mubr.f32.mxu0 0.0
    %2040 = vmatmul.mubr.f32.gmra.mxu0 %v1893
    %v2041 = vpop.f32.mrf.mxu0
    %v2042 = vadd.f32 %v1841, %v2041
    %v2043 = vpop.f32.mrf.mxu0
    %2044 = vdwg.mxu0
    %s2045 = scalar_lea.vmem %s4, 128
    %v2046 = vld [vmem:[%s2045] sm:$0xff]
    %v2047 = vld [vmem:[%s2045 + $0x8] sm:$0xff]
    %v2048 = vld [vmem:[%s2045 + $0x10] sm:$0xff]
    %v2049 = vld [vmem:[%s2045 + $0x18] sm:$0xff]
    %v2050 = vld [vmem:[%s2045 + $0x20] sm:$0xff]
    %v2051 = vld [vmem:[%s2045 + $0x28] sm:$0xff]
    %v2052 = vld [vmem:[%s2045 + $0x30] sm:$0xff]
    %v2053 = vld [vmem:[%s2045 + $0x38] sm:$0xff]
    %v2055 = vsel %vm124, %v1609, 0
    %v2058 = vsel %vm124, %v1610, 0
    %v2061 = vsel %vm124, %v1611, 0
    %v2064 = vsel %vm124, %v1612, 0
    %v2067 = vsel %vm124, %v1613, 0
    %v2070 = vsel %vm124, %v1614, 0
    %v2073 = vsel %vm124, %v1615, 0
    %v2076 = vsel %vm124, %v1616, 0
    %v2079 = vsel %vm124, %v1617, 0
    %v2082 = vsel %vm124, %v1618, 0
    %v2085 = vsel %vm124, %v1619, 0
    %v2088 = vsel %vm124, %v1620, 0
    %v2091 = vsel %vm124, %v1621, 0
    %v2094 = vsel %vm124, %v1622, 0
    %v2097 = vsel %vm124, %v1623, 0
    %v2100 = vsel %vm124, %v1624, 0
    %v2103 = vsel %vm124, %v1625, 0
    %2105 = vmatprep.subr.mxu0 0.0
    %2106 = vmatpush1.msra.mxu0 0.0
    %2107 = vmatprep.subr.mxu0 0.0
    %2108 = vmatpush1.msra.mxu0 0.0
    %2109 = vmatprep.subr.mxu0 0.0
    %2110 = vmatpush1.msra.mxu0 0.0
    %2111 = vmatprep.subr.mxu0 0.0
    %2112 = vmatpush1.msra.mxu0 0.0
    %2113 = vmatprep.subr.mxu0 0.0
    %2114 = vmatpush1.msra.mxu0 0.0
    %2115 = vmatprep.subr.mxu0 0.0
    %2116 = vmatpush1.msra.mxu0 0.0
    %2117 = vmatprep.subr.mxu0 0.0
    %2118 = vmatpush1.msra.mxu0 0.0
    %2119 = vmatprep.subr.mxu0 0.0
    %2120 = vmatpush1.msra.mxu0 0.0
    %2121 = vmatprep.subr.mxu0 0.0
    %2122 = vmatpush1.msra.mxu0 %v2053
    %2123 = vmatprep.subr.mxu0 0.0
    %2124 = vmatpush1.msra.mxu0 %v2052
    %2125 = vmatprep.subr.mxu0 0.0
    %2126 = vmatpush1.msra.mxu0 %v2051
    %2127 = vmatprep.subr.mxu0 0.0
    %2128 = vmatpush1.msra.mxu0 %v2050
    %2129 = vmatprep.subr.mxu0 0.0
    %2130 = vmatpush1.msra.mxu0 %v2049
    %2131 = vmatprep.subr.mxu0 0.0
    %2132 = vmatpush1.msra.mxu0 %v2048
    %2133 = vmatprep.subr.mxu0 0.0
    %2134 = vmatpush1.msra.mxu0 %v2047
    %2135 = vmatprep.subr.mxu0 0.0
    %2136 = vmatpush1.msra.mxu0 %v2046
    %2137 = vmatprep.subr.mxu0 0.0
    %2138 = vmatpush2.msra.mxu0 0.0
    %2139 = vmatprep.subr.mxu0 0.0
    %2140 = vmatpush2.msra.mxu0 0.0
    %2141 = vmatprep.subr.mxu0 0.0
    %2142 = vmatpush2.msra.mxu0 0.0
    %2143 = vmatprep.subr.mxu0 0.0
    %2144 = vmatpush2.msra.mxu0 0.0
    %2145 = vmatprep.subr.mxu0 0.0
    %2146 = vmatpush2.msra.mxu0 0.0
    %2147 = vmatprep.subr.mxu0 0.0
    %2148 = vmatpush2.msra.mxu0 0.0
    %2149 = vmatprep.subr.mxu0 0.0
    %2150 = vmatpush2.msra.mxu0 0.0
    %2151 = vmatprep.subr.mxu0 0.0
    %2152 = vmatpush2.msra.mxu0 0.0
    %2153 = vmatprep.subr.mxu0 0.0
    %2154 = vmatpush2.msra.mxu0 0.0
    %2155 = vmatprep.subr.mxu0 0.0
    %2156 = vmatpush2.msra.mxu0 0.0
    %2157 = vmatprep.subr.mxu0 0.0
    %2158 = vmatpush2.msra.mxu0 0.0
    %2159 = vmatprep.subr.mxu0 0.0
    %2160 = vmatpush2.msra.mxu0 0.0
    %2161 = vmatprep.subr.mxu0 0.0
    %2162 = vmatpush2.msra.mxu0 0.0
    %2163 = vmatprep.subr.mxu0 0.0
    %2164 = vmatpush2.msra.mxu0 0.0
    %2165 = vmatprep.subr.mxu0 0.0
    %2166 = vmatpush2.msra.mxu0 0.0
    %2167 = vmatprep.subr.mxu0 0.0
    %2168 = vmatpush2.msra.mxu0 0.0
    %2169 = vmatprep.mubr.f32.mxu0 0.0
    %2170 = vmatmul.mubr.f32.gmra.mxu0 %v2055
    %v2171 = vpop.f32.mrf.mxu0
    %v2172 = vadd.f32 0.0, %v2171
    %v2173 = vpop.f32.mrf.mxu0
    %2174 = vmatprep.mubr.f32.mxu0 0.0
    %2175 = vmatmul.mubr.f32.gmra.mxu0 %v2058
    %v2176 = vpop.f32.mrf.mxu0
    %v2177 = vadd.f32 0.0, %v2176
    %v2178 = vpop.f32.mrf.mxu0
    %2179 = vmatprep.mubr.f32.mxu0 0.0
    %2180 = vmatmul.mubr.f32.gmra.mxu0 %v2061
    %v2181 = vpop.f32.mrf.mxu0
    %v2182 = vadd.f32 0.0, %v2181
    %v2183 = vpop.f32.mrf.mxu0
    %2184 = vmatprep.mubr.f32.mxu0 0.0
    %2185 = vmatmul.mubr.f32.gmra.mxu0 %v2064
    %v2186 = vpop.f32.mrf.mxu0
    %v2187 = vadd.f32 0.0, %v2186
    %v2188 = vpop.f32.mrf.mxu0
    %2189 = vmatprep.mubr.f32.mxu0 0.0
    %2190 = vmatmul.mubr.f32.gmra.mxu0 %v2067
    %v2191 = vpop.f32.mrf.mxu0
    %v2192 = vadd.f32 0.0, %v2191
    %v2193 = vpop.f32.mrf.mxu0
    %2194 = vmatprep.mubr.f32.mxu0 0.0
    %2195 = vmatmul.mubr.f32.gmra.mxu0 %v2070
    %v2196 = vpop.f32.mrf.mxu0
    %v2197 = vadd.f32 0.0, %v2196
    %v2198 = vpop.f32.mrf.mxu0
    %2199 = vmatprep.mubr.f32.mxu0 0.0
    %2200 = vmatmul.mubr.f32.gmra.mxu0 %v2073
    %v2201 = vpop.f32.mrf.mxu0
    %v2202 = vadd.f32 0.0, %v2201
    %v2203 = vpop.f32.mrf.mxu0
    %2204 = vmatprep.mubr.f32.mxu0 0.0
    %2205 = vmatmul.mubr.f32.gmra.mxu0 %v2076
    %v2206 = vpop.f32.mrf.mxu0
    %v2207 = vadd.f32 0.0, %v2206
    %v2208 = vpop.f32.mrf.mxu0
    %2209 = vmatprep.mubr.f32.mxu0 0.0
    %2210 = vmatmul.mubr.f32.gmra.mxu0 %v2079
    %v2211 = vpop.f32.mrf.mxu0
    %v2212 = vadd.f32 0.0, %v2211
    %v2213 = vpop.f32.mrf.mxu0
    %2214 = vmatprep.mubr.f32.mxu0 0.0
    %2215 = vmatmul.mubr.f32.gmra.mxu0 %v2082
    %v2216 = vpop.f32.mrf.mxu0
    %v2217 = vadd.f32 0.0, %v2216
    %v2218 = vpop.f32.mrf.mxu0
    %2219 = vmatprep.mubr.f32.mxu0 0.0
    %2220 = vmatmul.mubr.f32.gmra.mxu0 %v2085
    %v2221 = vpop.f32.mrf.mxu0
    %v2222 = vadd.f32 0.0, %v2221
    %v2223 = vpop.f32.mrf.mxu0
    %2224 = vmatprep.mubr.f32.mxu0 0.0
    %2225 = vmatmul.mubr.f32.gmra.mxu0 %v2088
    %v2226 = vpop.f32.mrf.mxu0
    %v2227 = vadd.f32 0.0, %v2226
    %v2228 = vpop.f32.mrf.mxu0
    %2229 = vmatprep.mubr.f32.mxu0 0.0
    %2230 = vmatmul.mubr.f32.gmra.mxu0 %v2091
    %v2231 = vpop.f32.mrf.mxu0
    %v2232 = vadd.f32 0.0, %v2231
    %v2233 = vpop.f32.mrf.mxu0
    %2234 = vmatprep.mubr.f32.mxu0 0.0
    %2235 = vmatmul.mubr.f32.gmra.mxu0 %v2094
    %v2236 = vpop.f32.mrf.mxu0
    %v2237 = vadd.f32 0.0, %v2236
    %v2238 = vpop.f32.mrf.mxu0
    %2239 = vmatprep.mubr.f32.mxu0 0.0
    %2240 = vmatmul.mubr.f32.gmra.mxu0 %v2097
    %v2241 = vpop.f32.mrf.mxu0
    %v2242 = vadd.f32 0.0, %v2241
    %v2243 = vpop.f32.mrf.mxu0
    %2244 = vmatprep.mubr.f32.mxu0 0.0
    %2245 = vmatmul.mubr.f32.gmra.mxu0 %v2100
    %v2246 = vpop.f32.mrf.mxu0
    %v2247 = vadd.f32 0.0, %v2246
    %v2248 = vpop.f32.mrf.mxu0
    %2249 = vmatprep.mubr.f32.mxu0 0.0
    %2250 = vmatmul.mubr.f32.gmra.mxu0 %v2103
    %v2251 = vpop.f32.mrf.mxu0
    %v2252 = vadd.f32 0.0, %v2251
    %v2253 = vpop.f32.mrf.mxu0
    %2254 = vdwg.mxu0
    %v2255 = vadd.f32 %v1962, %v2172
    %v2256 = vadd.f32 %v1967, %v2177
    %v2257 = vadd.f32 %v1972, %v2182
    %v2258 = vadd.f32 %v1977, %v2187
    %v2259 = vadd.f32 %v1982, %v2192
    %v2260 = vadd.f32 %v1987, %v2197
    %v2261 = vadd.f32 %v1992, %v2202
    %v2262 = vadd.f32 %v1997, %v2207
    %v2263 = vadd.f32 %v2002, %v2212
    %v2264 = vadd.f32 %v2007, %v2217
    %v2265 = vadd.f32 %v2012, %v2222
    %v2266 = vadd.f32 %v2017, %v2227
    %v2267 = vadd.f32 %v2022, %v2232
    %v2268 = vadd.f32 %v2027, %v2237
    %v2269 = vadd.f32 %v2032, %v2242
    %v2270 = vadd.f32 %v2037, %v2247
    %v2271 = vadd.f32 %v2042, %v2252
    %v2272 = vld [vmem:[%s5] sm:$0x1]
    %v2274 = vlaneseq
    %v2275 = vshrl.u32 %v2274, 7
    %v2276 = vsub.s32 0, %v2275
    %v2277 = vrot.slane %v2272, %v2276
    %v2279 = vmul.f32 %v2255, %v2277
    %v2280 = vmul.f32 %v2256, %v2277
    %v2281 = vmul.f32 %v2257, %v2277
    %v2282 = vmul.f32 %v2258, %v2277
    %v2283 = vmul.f32 %v2259, %v2277
    %v2284 = vmul.f32 %v2260, %v2277
    %v2285 = vmul.f32 %v2261, %v2277
    %v2286 = vmul.f32 %v2262, %v2277
    %v2287 = vmul.f32 %v2263, %v2277
    %v2288 = vmul.f32 %v2264, %v2277
    %v2289 = vmul.f32 %v2265, %v2277
    %v2290 = vmul.f32 %v2266, %v2277
    %v2291 = vmul.f32 %v2267, %v2277
    %v2292 = vmul.f32 %v2268, %v2277
    %v2293 = vmul.f32 %v2269, %v2277
    %v2294 = vmul.f32 %v2270, %v2277
    %v2295 = vmul.f32 %v2271, %v2277
    %v2296 = vld [vmem:[%s6] sm:$0x1]
    %v2298 = vlaneseq
    %v2299 = vshrl.u32 %v2298, 7
    %v2300 = vsub.s32 0, %v2299
    %v2301 = vrot.slane %v2296, %v2300
    %v2303 = vadd.f32 %v2279, %v2301
    %v2304 = vadd.f32 %v2280, %v2301
    %v2305 = vadd.f32 %v2281, %v2301
    %v2306 = vadd.f32 %v2282, %v2301
    %v2307 = vadd.f32 %v2283, %v2301
    %v2308 = vadd.f32 %v2284, %v2301
    %v2309 = vadd.f32 %v2285, %v2301
    %v2310 = vadd.f32 %v2286, %v2301
    %v2311 = vadd.f32 %v2287, %v2301
    %v2312 = vadd.f32 %v2288, %v2301
    %v2313 = vadd.f32 %v2289, %v2301
    %v2314 = vadd.f32 %v2290, %v2301
    %v2315 = vadd.f32 %v2291, %v2301
    %v2316 = vadd.f32 %v2292, %v2301
    %v2317 = vadd.f32 %v2293, %v2301
    %v2318 = vadd.f32 %v2294, %v2301
    %v2319 = vadd.f32 %v2295, %v2301
    %v2320 = vmax.f32 %v2303, 0.0
    %v2321 = vmax.f32 %v2304, 0.0
    %v2322 = vmax.f32 %v2305, 0.0
    %v2323 = vmax.f32 %v2306, 0.0
    %v2324 = vmax.f32 %v2307, 0.0
    %v2325 = vmax.f32 %v2308, 0.0
    %v2326 = vmax.f32 %v2309, 0.0
    %v2327 = vmax.f32 %v2310, 0.0
    %v2328 = vmax.f32 %v2311, 0.0
    %v2329 = vmax.f32 %v2312, 0.0
    %v2330 = vmax.f32 %v2313, 0.0
    %v2331 = vmax.f32 %v2314, 0.0
    %v2332 = vmax.f32 %v2315, 0.0
    %v2333 = vmax.f32 %v2316, 0.0
    %v2334 = vmax.f32 %v2317, 0.0
    %v2335 = vmax.f32 %v2318, 0.0
    %v2336 = vmax.f32 %v2319, 0.0
    %v2337 = vld [vmem:[%s8] sm:$0xff]
    %v2338 = vld [vmem:[%s8 + $0x8] sm:$0xff]
    %vm2339 = vcmask 64512
    %v2341 = vsel %vm2339, %v2338, 0
    %2343 = vmatprep.subr.mxu0 0.0
    %2344 = vmatpush1.msra.mxu0 %v2335
    %2345 = vmatprep.subr.mxu0 0.0
    %2346 = vmatpush1.msra.mxu0 %v2334
    %2347 = vmatprep.subr.mxu0 0.0
    %2348 = vmatpush1.msra.mxu0 %v2333
    %2349 = vmatprep.subr.mxu0 0.0
    %2350 = vmatpush1.msra.mxu0 %v2332
    %2351 = vmatprep.subr.mxu0 0.0
    %2352 = vmatpush1.msra.mxu0 %v2331
    %2353 = vmatprep.subr.mxu0 0.0
    %2354 = vmatpush1.msra.mxu0 %v2330
    %2355 = vmatprep.subr.mxu0 0.0
    %2356 = vmatpush1.msra.mxu0 %v2329
    %2357 = vmatprep.subr.mxu0 0.0
    %2358 = vmatpush1.msra.mxu0 %v2328
    %2359 = vmatprep.subr.mxu0 0.0
    %2360 = vmatpush1.msra.mxu0 %v2327
    %2361 = vmatprep.subr.mxu0 0.0
    %2362 = vmatpush1.msra.mxu0 %v2326
    %2363 = vmatprep.subr.mxu0 0.0
    %2364 = vmatpush1.msra.mxu0 %v2325
    %2365 = vmatprep.subr.mxu0 0.0
    %2366 = vmatpush1.msra.mxu0 %v2324
    %2367 = vmatprep.subr.mxu0 0.0
    %2368 = vmatpush1.msra.mxu0 %v2323
    %2369 = vmatprep.subr.mxu0 0.0
    %2370 = vmatpush1.msra.mxu0 %v2322
    %2371 = vmatprep.subr.mxu0 0.0
    %2372 = vmatpush1.msra.mxu0 %v2321
    %2373 = vmatprep.subr.mxu0 0.0
    %2374 = vmatpush1.msra.mxu0 %v2320
    %2375 = vmatprep.subr.mxu0 0.0
    %2376 = vmatpush2.msra.mxu0 0.0
    %2377 = vmatprep.subr.mxu0 0.0
    %2378 = vmatpush2.msra.mxu0 0.0
    %2379 = vmatprep.subr.mxu0 0.0
    %2380 = vmatpush2.msra.mxu0 0.0
    %2381 = vmatprep.subr.mxu0 0.0
    %2382 = vmatpush2.msra.mxu0 0.0
    %2383 = vmatprep.subr.mxu0 0.0
    %2384 = vmatpush2.msra.mxu0 0.0
    %2385 = vmatprep.subr.mxu0 0.0
    %2386 = vmatpush2.msra.mxu0 0.0
    %2387 = vmatprep.subr.mxu0 0.0
    %2388 = vmatpush2.msra.mxu0 0.0
    %2389 = vmatprep.subr.mxu0 0.0
    %2390 = vmatpush2.msra.mxu0 0.0
    %2391 = vmatprep.subr.mxu0 0.0
    %2392 = vmatpush2.msra.mxu0 0.0
    %2393 = vmatprep.subr.mxu0 0.0
    %2394 = vmatpush2.msra.mxu0 0.0
    %2395 = vmatprep.subr.mxu0 0.0
    %2396 = vmatpush2.msra.mxu0 0.0
    %2397 = vmatprep.subr.mxu0 0.0
    %2398 = vmatpush2.msra.mxu0 0.0
    %2399 = vmatprep.subr.mxu0 0.0
    %2400 = vmatpush2.msra.mxu0 0.0
    %2401 = vmatprep.subr.mxu0 0.0
    %2402 = vmatpush2.msra.mxu0 0.0
    %2403 = vmatprep.subr.mxu0 0.0
    %2404 = vmatpush2.msra.mxu0 0.0
    %2405 = vmatprep.subr.mxu0 0.0
    %2406 = vmatpush2.msra.mxu0 %v2336
    %2407 = vmatprep.mubr.f32.mxu0 %v2341
    %2408 = vmatmul.mubr.f32.gmra.mxu0 %v2337
    %v2409 = vpop.f32.mrf.mxu0
    %v2410 = vadd.f32 0.0, %v2409
    %v2411 = vpop.f32.mrf.mxu0
    %2412 = vdwg.mxu0
    %v2413 = vld [vmem:[%s9] sm:$0xff]
    %v2414 = vld [vmem:[%s9 + $0x8] sm:$0xff]
    %v2415 = vld [vmem:[%s9 + $0x10] sm:$0xff]
    %v2416 = vld [vmem:[%s9 + $0x18] sm:$0xff]
    %v2417 = vld [vmem:[%s9 + $0x20] sm:$0xff]
    %v2418 = vld [vmem:[%s9 + $0x28] sm:$0xff]
    %v2419 = vld [vmem:[%s9 + $0x30] sm:$0xff]
    %v2420 = vld [vmem:[%s9 + $0x38] sm:$0xff]
    %v2421 = vld [vmem:[%s9 + $0x40] sm:$0xff]
    %v2422 = vld [vmem:[%s9 + $0x48] sm:$0xff]
    %v2423 = vld [vmem:[%s9 + $0x50] sm:$0xff]
    %v2424 = vld [vmem:[%s9 + $0x58] sm:$0xff]
    %v2425 = vld [vmem:[%s9 + $0x60] sm:$0xff]
    %v2426 = vld [vmem:[%s9 + $0x68] sm:$0xff]
    %v2427 = vld [vmem:[%s9 + $0x70] sm:$0xff]
    %v2428 = vld [vmem:[%s9 + $0x78] sm:$0xff]
    %v2429 = vld [vmem:[%s10] sm:$0x1]
    %v2431 = vlaneseq
    %v2432 = vshrl.u32 %v2431, 7
    %v2433 = vsub.s32 0, %v2432
    %v2434 = vrot.slane %v2429, %v2433
    %2436 = vmatprep.subr.mxu0 0.0
    %2437 = vmatpush1.msra.mxu0 %v2428
    %2438 = vmatprep.subr.mxu0 0.0
    %2439 = vmatpush1.msra.mxu0 %v2427
    %2440 = vmatprep.subr.mxu0 0.0
    %2441 = vmatpush1.msra.mxu0 %v2426
    %2442 = vmatprep.subr.mxu0 0.0
    %2443 = vmatpush1.msra.mxu0 %v2425
    %2444 = vmatprep.subr.mxu0 0.0
    %2445 = vmatpush1.msra.mxu0 %v2424
    %2446 = vmatprep.subr.mxu0 0.0
    %2447 = vmatpush1.msra.mxu0 %v2423
    %2448 = vmatprep.subr.mxu0 0.0
    %2449 = vmatpush1.msra.mxu0 %v2422
    %2450 = vmatprep.subr.mxu0 0.0
    %2451 = vmatpush1.msra.mxu0 %v2421
    %2452 = vmatprep.subr.mxu0 0.0
    %2453 = vmatpush1.msra.mxu0 %v2420
    %2454 = vmatprep.subr.mxu0 0.0
    %2455 = vmatpush1.msra.mxu0 %v2419
    %2456 = vmatprep.subr.mxu0 0.0
    %2457 = vmatpush1.msra.mxu0 %v2418
    %2458 = vmatprep.subr.mxu0 0.0
    %2459 = vmatpush1.msra.mxu0 %v2417
    %2460 = vmatprep.subr.mxu0 0.0
    %2461 = vmatpush1.msra.mxu0 %v2416
    %2462 = vmatprep.subr.mxu0 0.0
    %2463 = vmatpush1.msra.mxu0 %v2415
    %2464 = vmatprep.subr.mxu0 0.0
    %2465 = vmatpush1.msra.mxu0 %v2414
    %2466 = vmatprep.subr.mxu0 0.0
    %2467 = vmatpush1.msra.mxu0 %v2413
    %2468 = vmatprep.subr.mxu0 0.0
    %2469 = vmatpush2.msra.mxu0 0.0
    %2470 = vmatprep.subr.mxu0 0.0
    %2471 = vmatpush2.msra.mxu0 0.0
    %2472 = vmatprep.subr.mxu0 0.0
    %2473 = vmatpush2.msra.mxu0 0.0
    %2474 = vmatprep.subr.mxu0 0.0
    %2475 = vmatpush2.msra.mxu0 0.0
    %2476 = vmatprep.subr.mxu0 0.0
    %2477 = vmatpush2.msra.mxu0 0.0
    %2478 = vmatprep.subr.mxu0 0.0
    %2479 = vmatpush2.msra.mxu0 0.0
    %2480 = vmatprep.subr.mxu0 0.0
    %2481 = vmatpush2.msra.mxu0 0.0
    %2482 = vmatprep.subr.mxu0 0.0
    %2483 = vmatpush2.msra.mxu0 0.0
    %2484 = vmatprep.subr.mxu0 0.0
    %2485 = vmatpush2.msra.mxu0 0.0
    %2486 = vmatprep.subr.mxu0 0.0
    %2487 = vmatpush2.msra.mxu0 0.0
    %2488 = vmatprep.subr.mxu0 0.0
    %2489 = vmatpush2.msra.mxu0 0.0
    %2490 = vmatprep.subr.mxu0 0.0
    %2491 = vmatpush2.msra.mxu0 0.0
    %2492 = vmatprep.subr.mxu0 0.0
    %2493 = vmatpush2.msra.mxu0 0.0
    %2494 = vmatprep.subr.mxu0 0.0
    %2495 = vmatpush2.msra.mxu0 0.0
    %2496 = vmatprep.subr.mxu0 0.0
    %2497 = vmatpush2.msra.mxu0 0.0
    %2498 = vmatprep.subr.mxu0 0.0
    %2499 = vmatpush2.msra.mxu0 0.0
    %2500 = vmatprep.mubr.f32.mxu0 0.0
    %2501 = vmatmul.mubr.f32.gmra.mxu0 %v2410
    %v2502 = vpop.f32.mrf.mxu0
    %v2503 = vadd.f32 %v2434, %v2502
    %v2504 = vpop.f32.mrf.mxu0
    %2505 = vdwg.mxu0
    %v2506 = vmax.f32 %v2503, 0.0
    %2507 = vst [vmem:[#allocation4] sm:$0xff] %v2506
    // Predicated region
    $region50: #{tpu_custom_call.1} parent=1 // pred_check
      _
    $region51: #{tpu_custom_call.1} parent=1 // pred_check_branch
      %2509 = sbr.rel (0) target = $region53
    $region52: #{tpu_custom_call.1} parent=1 // pred_region
      %s2511 = ssub.s32 128, 128
      %2512 = vsyncadd [#allocation5], %s2511
      %s2514 = sshll.u32 [#allocation4], 4
      %s2515 = int_to_ptr.vmem [resolvable:$true] %s2514
      %2517 = dma.vmem_to_hbm [thread:$0]  %s2515, 128, %s11, [#allocation5]
    $region53: #{tpu_custom_call.1} parent=1 // pred_fallthru
      _
    // Predicated region
    $region54: #{tpu_custom_call.1} parent=1 // pred_check
      _
    $region55: #{tpu_custom_call.1} parent=1 // pred_check_branch
      %2519 = sbr.rel (0) target = $region57
    $region56: #{tpu_custom_call.1} parent=1 // pred_region
      %2520 = dma.done [#allocation5], 128
    $region57: #{tpu_custom_call.1} parent=1 // pred_fallthru
      _
    %2521 = vsyncpa [#allocation5], 1

</llo_original>
